<compile_context>
chip_gen: v7x
topology: tpu7x:2x2x1
jax: 0.10.0
libtpu: 0.0.40
codegen_flags: <defaults>
</compile_context>

<pallas_src>
import jax
import jax.numpy as jnp
import numpy as np
from jax import lax
from jax.experimental import pallas as pl
from jax.experimental.pallas import tpu as pltpu


def _round_up(x, m):
    return (x + m - 1) // m * m


# --------------------------------------------------------------------------- #
# Single fused Pallas kernel: 4 MXU matmuls, activations live in registers.
# --------------------------------------------------------------------------- #
def _rnd_kernel(x_ref, t1_ref, b1_ref, t2_ref, b2_ref, t3_ref, b3_ref,
                wfc_ref, bfc_ref, out_ref):
    a = x_ref[...]                                                     # (BT, P0)
    a = jnp.maximum(
        jnp.dot(a, t1_ref[...], preferred_element_type=jnp.float32) + b1_ref[...], 0.0)
    a = jnp.maximum(
        jnp.dot(a, t2_ref[...], preferred_element_type=jnp.float32) + b2_ref[...], 0.0)
    a = jnp.maximum(
        jnp.dot(a, t3_ref[...], preferred_element_type=jnp.float32) + b3_ref[...], 0.0)
    # fc1 is a plain Linear (no activation after it).
    out_ref[...] = (
        jnp.dot(a, wfc_ref[...], preferred_element_type=jnp.float32) + bfc_ref[...])


# --------------------------------------------------------------------------- #
# One-time parameter folding / padding (outside the per-forward path)
# --------------------------------------------------------------------------- #
def _conv_toeplitz(w_hwio, h_in, w_in):
    """Full VALID-conv Toeplitz matrix in (h,w,c)-flattened, 128-lane-padded layout."""
    kh, kw, cin, cout = w_hwio.shape
    h_out, w_out = h_in - kh + 1, w_in - kw + 1
    p_in = _round_up(h_in * w_in * cin, 128)
    p_out = _round_up(h_out * w_out * cout, 128)
    t = np.zeros((p_in, p_out), np.float32)
    w = np.asarray(w_hwio, np.float32)
    for ho in range(h_out):
        for wo in range(w_out):
            col = (ho * w_out + wo) * cout
            for i in range(kh):
                for j in range(kw):
                    row = ((ho + i) * w_in + (wo + j)) * cin
                    t[row:row + cin, col:col + cout] = w[i, j]
    return t, h_out, w_out


def _conv_bias_row(bias, h_out, w_out):
    b = np.asarray(bias, np.float32)
    cout = b.shape[0]
    row = np.zeros((1, _round_up(h_out * w_out * cout, 128)), np.float32)
    for k in range(h_out * w_out):
        row[0, k * cout:(k + 1) * cout] = b
    return row


def _fold_fc_weight(w_fc, h3, w3, c3, hidden):
    # w_fc: (emb, hidden), emb indexed in PyTorch NCHW flatten order
    #   f = c*(h3*w3) + ho*w3 + wo.
    # Re-indexed to the kernel's (ho*w3 + wo)*c3 + c lane layout; pad lanes stay 0.
    p_in = _round_up(h3 * w3 * c3, 128)
    hp = _round_up(hidden, 128)
    wk = np.zeros((p_in, hp), np.float32)
    w = np.asarray(w_fc, np.float32)
    for c in range(c3):
        for ho in range(h3):
            for wo in range(w3):
                f = c * (h3 * w3) + ho * w3 + wo
                wk[(ho * w3 + wo) * c3 + c, :hidden] = w[f]
    return wk


def prepare_packed_params(params, n, m, hidden):
    h, w, c = n, m, 3
    consts = {}
    for li in (1, 2, 3):
        w_hwio = np.asarray(params[f"conv{li}"]["w"], np.float32)
        t, h, w = _conv_toeplitz(w_hwio, h, w)
        c = w_hwio.shape[-1]
        consts[f"t{li}"] = jnp.asarray(t)
        consts[f"b{li}"] = jnp.asarray(
            _conv_bias_row(params[f"conv{li}"]["b"], h, w))
    hidden_pad = _round_up(hidden, 128)
    consts["wfc"] = jnp.asarray(
        _fold_fc_weight(params["fc1"]["w"], h, w, c, hidden))
    bfc = np.zeros((1, hidden_pad), np.float32)
    bfc[0, :hidden] = np.asarray(params["fc1"]["b"], np.float32)
    consts["bfc"] = jnp.asarray(bfc)

    cfg = dict(p0=_round_up(n * m * 3, 128), hidden=hidden, hidden_pad=hidden_pad)
    return consts, cfg


# --------------------------------------------------------------------------- #
# Forward wrapper
# --------------------------------------------------------------------------- #
def random_network_forward(consts, cfg, x_nchw):
    batch = x_nchw.shape[0]
    p0, hp = cfg["p0"], cfg["hidden_pad"]

    # Batch tile: sublane-aligned, capped so weights + tiles stay well inside VMEM.
    bt = min(_round_up(batch, 8), 512)
    bp = _round_up(batch, bt)

    # NCHW -> NHWC -> (B, H*W*C), lane- and sublane-pad.  Only layout plumbing.
    x = jnp.transpose(x_nchw, (0, 2, 3, 1)).astype(jnp.float32).reshape(batch, -1)
    x = jnp.pad(x, ((0, bp - batch), (0, p0 - x.shape[1])))

    weights = (consts["t1"], consts["b1"], consts["t2"], consts["b2"],
               consts["t3"], consts["b3"], consts["wfc"], consts["bfc"])

    def _resident(a):  # same block every grid step -> stays resident in VMEM
        return pl.BlockSpec(a.shape, lambda i, _nd=a.ndim: (0,) * _nd)

    out = pl.pallas_call(
        _rnd_kernel,
        out_shape=jax.ShapeDtypeStruct((bp, hp), jnp.float32),
        grid=(bp // bt,),
        in_specs=[pl.BlockSpec((bt, p0), lambda i: (i, 0))]
                 + [_resident(a) for a in weights],
        out_specs=pl.BlockSpec((bt, hp), lambda i: (i, 0)),
        compiler_params=pltpu.CompilerParams(
            dimension_semantics=("parallel",)),
    )(x, *weights)
    return out[:batch, :cfg["hidden"]]


# --------------------------------------------------------------------------- #
# Deterministic synthetic parameters (RandomNetwork: 3 convs + 1 linear, no BN)
# --------------------------------------------------------------------------- #
def init_params(key, n, m, hidden):
    emb = (n - 4) * (m - 4) * 64
    conv_shapes = [(3, 3, 3, 16), (2, 2, 16, 32), (2, 2, 32, 64)]
    params = {}
    keys = iter(jax.random.split(key, 16))
    for li, shp in enumerate(conv_shapes, start=1):
        cout = shp[-1]
        params[f"conv{li}"] = dict(
            w=0.1 * jax.random.normal(next(keys), shp, jnp.float32),
            b=0.1 * jax.random.normal(next(keys), (cout,), jnp.float32))
    params["fc1"] = dict(
        w=(1.0 / np.sqrt(emb)) * jax.random.normal(next(keys), (emb, hidden), jnp.float32),
        b=0.1 * jax.random.normal(next(keys), (hidden,), jnp.float32))
    return params


# --------------------------------------------------------------------------- #
# Pure-JAX reference (matches the PyTorch module semantics)
# --------------------------------------------------------------------------- #
def reference_forward(params, x_nchw):
    x = jnp.transpose(x_nchw, (0, 2, 3, 1)).astype(jnp.float32)
    for li in (1, 2, 3):
        p = params[f"conv{li}"]
        x = lax.conv_general_dilated(x, p["w"], (1, 1), "VALID",
                                     dimension_numbers=("NHWC", "HWIO", "NHWC"))
        x = jnp.maximum(x + p["b"], 0.0)
    b = x.shape[0]
    x = jnp.transpose(x, (0, 3, 1, 2)).reshape(b, -1)   # PyTorch x.view(b, -1) on NCHW
    return x @ params["fc1"]["w"] + params["fc1"]["b"]


if __name__ == "__main__":
    # obs_space['image'] = (7, 7, 3) (MiniGrid-style), cfg.hidden_size = 64, batch = 2
    n, m, hidden, batch = 7, 7, 64, 2
    key = jax.random.PRNGKey(0)
    k_param, k_x = jax.random.split(key)
    params = init_params(k_param, n, m, hidden)
    consts, cfg = prepare_packed_params(params, n, m, hidden)
    x = jax.random.normal(k_x, (batch, 3, n, m), jnp.float32)   # NCHW like PyTorch

    fwd = jax.jit(lambda xx: random_network_forward(consts, cfg, xx))
    out = jax.block_until_ready(fwd(x))
    assert out.shape == (batch, hidden), out.shape

    ref = jax.block_until_ready(reference_forward(params, x))
    np.testing.assert_allclose(np.asarray(out), np.asarray(ref), rtol=2e-4, atol=2e-4)

    print("KERNEL_OK")
</pallas_src>

<mosaic_0001>
module attributes {stable_mosaic.version = 11 : i64} {
  func.func @_rnd_kernel(%arg0: i32, %arg1: memref<8x256xf32, #tpu.memory_space<vmem>>, %arg2: memref<256x512xf32, #tpu.memory_space<vmem>>, %arg3: memref<1x512xf32, #tpu.memory_space<vmem>>, %arg4: memref<512x512xf32, #tpu.memory_space<vmem>>, %arg5: memref<1x512xf32, #tpu.memory_space<vmem>>, %arg6: memref<512x640xf32, #tpu.memory_space<vmem>>, %arg7: memref<1x640xf32, #tpu.memory_space<vmem>>, %arg8: memref<640x128xf32, #tpu.memory_space<vmem>>, %arg9: memref<1x128xf32, #tpu.memory_space<vmem>>, %arg10: memref<8x128xf32, #tpu.memory_space<vmem>>) attributes {dimension_semantics = [#tpu.dimension_semantics<parallel>], iteration_bounds = array<i64: 1>, scalar_prefetch = 0 : i64, scratch_operands = 0 : i64, tpu.core_type = #tpu.core_type<tc>, window_params = [{transform_indices = @transform_0, window_bounds = array<i64: 8, 256>}, {pipeline_mode = #tpu.pipeline_mode<synchronous>, transform_indices = @transform_1, window_bounds = array<i64: 256, 512>}, {pipeline_mode = #tpu.pipeline_mode<synchronous>, transform_indices = @transform_2, window_bounds = array<i64: 1, 512>}, {pipeline_mode = #tpu.pipeline_mode<synchronous>, transform_indices = @transform_3, window_bounds = array<i64: 512, 512>}, {pipeline_mode = #tpu.pipeline_mode<synchronous>, transform_indices = @transform_4, window_bounds = array<i64: 1, 512>}, {pipeline_mode = #tpu.pipeline_mode<synchronous>, transform_indices = @transform_5, window_bounds = array<i64: 512, 640>}, {pipeline_mode = #tpu.pipeline_mode<synchronous>, transform_indices = @transform_6, window_bounds = array<i64: 1, 640>}, {pipeline_mode = #tpu.pipeline_mode<synchronous>, transform_indices = @transform_7, window_bounds = array<i64: 640, 128>}, {pipeline_mode = #tpu.pipeline_mode<synchronous>, transform_indices = @transform_8, window_bounds = array<i64: 1, 128>}, {transform_indices = @transform_9, window_bounds = array<i64: 8, 128>}]} {
    %c0 = arith.constant 0 : index
    %c0_0 = arith.constant 0 : index
    %0 = vector.load %arg1[%c0, %c0_0] : memref<8x256xf32, #tpu.memory_space<vmem>>, vector<8x256xf32>
    %c0_1 = arith.constant 0 : index
    %c0_2 = arith.constant 0 : index
    %1 = vector.load %arg2[%c0_1, %c0_2] : memref<256x512xf32, #tpu.memory_space<vmem>>, vector<256x512xf32>
    %cst = arith.constant dense<0.000000e+00> : vector<8x512xf32>
    %2 = tpu.matmul %0, %1, %cst {dimension_numbers = #tpu.dot_dimension_numbers<[1], [0], [0], [1], [0, 0, 1, 1], [], []>} : vector<8x256xf32>, vector<256x512xf32>, vector<8x512xf32> -> vector<8x512xf32>
    %c0_3 = arith.constant 0 : index
    %c0_4 = arith.constant 0 : index
    %3 = vector.load %arg3[%c0_3, %c0_4] : memref<1x512xf32, #tpu.memory_space<vmem>>, vector<1x512xf32>
    %4 = vector.broadcast %3 : vector<1x512xf32> to vector<8x512xf32>
    %5 = arith.addf %2, %4 : vector<8x512xf32>
    %cst_5 = arith.constant 0.000000e+00 : f32
    %6 = vector.broadcast %cst_5 : f32 to vector<8x512xf32>
    %7 = arith.maximumf %5, %6 : vector<8x512xf32>
    %c0_6 = arith.constant 0 : index
    %c0_7 = arith.constant 0 : index
    %8 = vector.load %arg4[%c0_6, %c0_7] : memref<512x512xf32, #tpu.memory_space<vmem>>, vector<512x512xf32>
    %cst_8 = arith.constant dense<0.000000e+00> : vector<8x512xf32>
    %9 = tpu.matmul %7, %8, %cst_8 {dimension_numbers = #tpu.dot_dimension_numbers<[1], [0], [0], [1], [0, 0, 1, 1], [], []>} : vector<8x512xf32>, vector<512x512xf32>, vector<8x512xf32> -> vector<8x512xf32>
    %c0_9 = arith.constant 0 : index
    %c0_10 = arith.constant 0 : index
    %10 = vector.load %arg5[%c0_9, %c0_10] : memref<1x512xf32, #tpu.memory_space<vmem>>, vector<1x512xf32>
    %11 = vector.broadcast %10 : vector<1x512xf32> to vector<8x512xf32>
    %12 = arith.addf %9, %11 : vector<8x512xf32>
    %cst_11 = arith.constant 0.000000e+00 : f32
    %13 = vector.broadcast %cst_11 : f32 to vector<8x512xf32>
    %14 = arith.maximumf %12, %13 : vector<8x512xf32>
    %c0_12 = arith.constant 0 : index
    %c0_13 = arith.constant 0 : index
    %15 = vector.load %arg6[%c0_12, %c0_13] : memref<512x640xf32, #tpu.memory_space<vmem>>, vector<512x640xf32>
    %cst_14 = arith.constant dense<0.000000e+00> : vector<8x640xf32>
    %16 = tpu.matmul %14, %15, %cst_14 {dimension_numbers = #tpu.dot_dimension_numbers<[1], [0], [0], [1], [0, 0, 1, 1], [], []>} : vector<8x512xf32>, vector<512x640xf32>, vector<8x640xf32> -> vector<8x640xf32>
    %c0_15 = arith.constant 0 : index
    %c0_16 = arith.constant 0 : index
    %17 = vector.load %arg7[%c0_15, %c0_16] : memref<1x640xf32, #tpu.memory_space<vmem>>, vector<1x640xf32>
    %18 = vector.broadcast %17 : vector<1x640xf32> to vector<8x640xf32>
    %19 = arith.addf %16, %18 : vector<8x640xf32>
    %cst_17 = arith.constant 0.000000e+00 : f32
    %20 = vector.broadcast %cst_17 : f32 to vector<8x640xf32>
    %21 = arith.maximumf %19, %20 : vector<8x640xf32>
    %c0_18 = arith.constant 0 : index
    %c0_19 = arith.constant 0 : index
    %22 = vector.load %arg8[%c0_18, %c0_19] : memref<640x128xf32, #tpu.memory_space<vmem>>, vector<640x128xf32>
    %cst_20 = arith.constant dense<0.000000e+00> : vector<8x128xf32>
    %23 = tpu.matmul %21, %22, %cst_20 {dimension_numbers = #tpu.dot_dimension_numbers<[1], [0], [0], [1], [0, 0, 1, 1], [], []>} : vector<8x640xf32>, vector<640x128xf32>, vector<8x128xf32> -> vector<8x128xf32>
    %c0_21 = arith.constant 0 : index
    %c0_22 = arith.constant 0 : index
    %24 = vector.load %arg9[%c0_21, %c0_22] : memref<1x128xf32, #tpu.memory_space<vmem>>, vector<1x128xf32>
    %25 = vector.broadcast %24 : vector<1x128xf32> to vector<8x128xf32>
    %26 = arith.addf %23, %25 : vector<8x128xf32>
    %c0_23 = arith.constant 0 : index
    %c0_24 = arith.constant 0 : index
    %27 = vector.load %arg10[%c0_23, %c0_24] : memref<8x128xf32, #tpu.memory_space<vmem>>, vector<8x128xf32>
    tpu.vector_store %arg10[%c0_23, %c0_24], %26 {strides = array<i32>} : memref<8x128xf32, #tpu.memory_space<vmem>>, vector<8x128xf32>,
    return
  }
  func.func @transform_0(%arg0: i32) -> (i32, i32) {
    %c0_i32 = arith.constant 0 : i32
    %c0_i32_0 = arith.constant 0 : i32
    return %arg0, %c0_i32 : i32, i32
  }
  func.func @transform_1(%arg0: i32) -> (i32, i32) {
    %c0_i32 = arith.constant 0 : i32
    %c0_i32_0 = arith.constant 0 : i32
    %c0_i32_1 = arith.constant 0 : i32
    return %c0_i32, %c0_i32_0 : i32, i32
  }
  func.func @transform_2(%arg0: i32) -> (i32, i32) {
    %c0_i32 = arith.constant 0 : i32
    %c0_i32_0 = arith.constant 0 : i32
    %c0_i32_1 = arith.constant 0 : i32
    return %c0_i32, %c0_i32_0 : i32, i32
  }
  func.func @transform_3(%arg0: i32) -> (i32, i32) {
    %c0_i32 = arith.constant 0 : i32
    %c0_i32_0 = arith.constant 0 : i32
    %c0_i32_1 = arith.constant 0 : i32
    return %c0_i32, %c0_i32_0 : i32, i32
  }
  func.func @transform_4(%arg0: i32) -> (i32, i32) {
    %c0_i32 = arith.constant 0 : i32
    %c0_i32_0 = arith.constant 0 : i32
    %c0_i32_1 = arith.constant 0 : i32
    return %c0_i32, %c0_i32_0 : i32, i32
  }
  func.func @transform_5(%arg0: i32) -> (i32, i32) {
    %c0_i32 = arith.constant 0 : i32
    %c0_i32_0 = arith.constant 0 : i32
    %c0_i32_1 = arith.constant 0 : i32
    return %c0_i32, %c0_i32_0 : i32, i32
  }
  func.func @transform_6(%arg0: i32) -> (i32, i32) {
    %c0_i32 = arith.constant 0 : i32
    %c0_i32_0 = arith.constant 0 : i32
    %c0_i32_1 = arith.constant 0 : i32
    return %c0_i32, %c0_i32_0 : i32, i32
  }
  func.func @transform_7(%arg0: i32) -> (i32, i32) {
    %c0_i32 = arith.constant 0 : i32
    %c0_i32_0 = arith.constant 0 : i32
    %c0_i32_1 = arith.constant 0 : i32
    return %c0_i32, %c0_i32_0 : i32, i32
  }
  func.func @transform_8(%arg0: i32) -> (i32, i32) {
    %c0_i32 = arith.constant 0 : i32
    %c0_i32_0 = arith.constant 0 : i32
    %c0_i32_1 = arith.constant 0 : i32
    return %c0_i32, %c0_i32_0 : i32, i32
  }
  func.func @transform_9(%arg0: i32) -> (i32, i32) {
    %c0_i32 = arith.constant 0 : i32
    %c0_i32_0 = arith.constant 0 : i32
    return %arg0, %c0_i32 : i32, i32
  }
}

</mosaic_0001>

<llo_original>
// kernel: _lambda_.1
$region0: #{_lambda_.1}
  #allocation0 [shape = 'u32[]', space=smem, size = 0x4, offset = 0x4, fixed_abs, tag = 'smem constant byte address 0x4 - core index']
  #allocation1 [shape = 'u32[144,128]{1,0:T(1,128)}', space=vmem, size = 0x12000, scoped, tag = 'internal scratch']
  %s0 = inlined_call_operand.vmem [shape: f32[8,256], index: 0, kind: input, shape index: {}]
  %s1 = inlined_call_operand.hbm [shape: f32[256,512], index: 1, kind: input, shape index: {}]
  %s2 = inlined_call_operand.hbm [shape: f32[1,512], index: 2, kind: input, shape index: {}]
  %s3 = inlined_call_operand.hbm [shape: f32[512,512], index: 3, kind: input, shape index: {}]
  %s4 = inlined_call_operand.hbm [shape: f32[1,512], index: 4, kind: input, shape index: {}]
  %s5 = inlined_call_operand.hbm [shape: f32[512,640], index: 5, kind: input, shape index: {}]
  %s6 = inlined_call_operand.hbm [shape: f32[1,640], index: 6, kind: input, shape index: {}]
  %s7 = inlined_call_operand.hbm [shape: f32[640,128], index: 7, kind: input, shape index: {}]
  %s8 = inlined_call_operand.hbm [shape: f32[1,128], index: 8, kind: input, shape index: {}]
  %s9 = inlined_call_operand.vmem [shape: f32[8,128], index: 9, kind: output, shape index: {}]
  %s10 = sld [smem:[#allocation0]]
  $region78: #{_lambda_.1} parent=0
    _
  %s12 = ssub.s32 1, %s10
  %s13 = scalar_select 0, %s12, %s10
  $region1: #{_lambda_.1} parent=0
    #allocation2 [shape = 'u8[524288]{0}', space=vmem, size = 0x80000, scoped, tag = 'input window, operand 1, single buffered']
    #allocation3 [shape = 's32[1]{0}', space=sflag, size = 0x4, scoped, tag = 'scoped memory for _lambda_.1']
    #allocation4 [shape = 'u8[2048]{0}', space=vmem, size = 0x800, scoped, tag = 'input window, operand 2, single buffered']
    #allocation5 [shape = 's32[1]{0}', space=sflag, size = 0x4, scoped, tag = 'scoped memory for _lambda_.1']
    #allocation6 [shape = 'u8[1048576]{0}', space=vmem, size = 0x100000, scoped, tag = 'input window, operand 3, single buffered']
    #allocation7 [shape = 'u8[2048]{0}', space=vmem, size = 0x800, scoped, tag = 'input window, operand 4, single buffered']
    #allocation8 [shape = 's32[1]{0}', space=sflag, size = 0x4, scoped, tag = 'scoped memory for _lambda_.1']
    #allocation9 [shape = 'u8[1310720]{0}', space=vmem, size = 0x140000, scoped, tag = 'input window, operand 5, single buffered']
    #allocation10 [shape = 'u8[2560]{0}', space=vmem, size = 0xc00, scoped, tag = 'input window, operand 6, single buffered']
    #allocation11 [shape = 's32[1]{0}', space=sflag, size = 0x4, scoped, tag = 'scoped memory for _lambda_.1']
    #allocation12 [shape = 'u8[327680]{0}', space=vmem, size = 0x50000, scoped, tag = 'input window, operand 7, single buffered']
    #allocation13 [shape = 'u8[512]{0}', space=vmem, size = 0x400, scoped, tag = 'input window, operand 8, single buffered']
    #allocation14 [shape = 's32[1]{0}', space=sflag, size = 0x4, scoped, tag = 'scoped memory for _lambda_.1']
    %14 = vsyncpa [#allocation3], 0
    %15 = vsyncpa [#allocation5], 0
    %16 = vsyncpa [#allocation8], 0
    %17 = vsyncpa [#allocation11], 0
    %18 = vsyncpa [#allocation14], 0
    // Predicated region
    $region2: #{_lambda_.1} parent=1 // pred_check
      _
    $region3: #{_lambda_.1} parent=1 // pred_check_branch
      %20 = sbr.rel (0) target = $region5
    $region4: #{_lambda_.1} parent=1 // pred_region
      _
    $region5: #{_lambda_.1} parent=1 // pred_fallthru
      _
    // Predicated region
    $region6: #{_lambda_.1} parent=1 // pred_check
      _
    $region7: #{_lambda_.1} parent=1 // pred_check_branch
      %22 = sbr.rel (0) target = $region9
    $region8: #{_lambda_.1} parent=1 // pred_region
      %s24 = ssub.s32 16384, 16384
      %25 = vsyncadd [#allocation3], %s24
      %s26 = sshll.u32 [#allocation2], 4
      %s27 = int_to_ptr.vmem [resolvable:$true] %s26
      %32 = dma.hbm_to_vmem [thread:$0]  %s1, 16384, %s27, [#allocation3], 512, 512, 32
    $region9: #{_lambda_.1} parent=1 // pred_fallthru
      _
    // Predicated region
    $region10: #{_lambda_.1} parent=1 // pred_check
      _
    $region11: #{_lambda_.1} parent=1 // pred_check_branch
      %34 = sbr.rel (0) target = $region13
    $region12: #{_lambda_.1} parent=1 // pred_region
      %s36 = ssub.s32 64, 64
      %37 = vsyncadd [#allocation5], %s36
      %s39 = sshll.u32 [#allocation4], 4
      %s40 = int_to_ptr.vmem [resolvable:$true] %s39
      %42 = dma.hbm_to_vmem [thread:$0]  %s2, 64, %s40, [#allocation5]
    $region13: #{_lambda_.1} parent=1 // pred_fallthru
      _
    // Predicated region
    $region14: #{_lambda_.1} parent=1 // pred_check
      _
    $region15: #{_lambda_.1} parent=1 // pred_check_branch
      %44 = sbr.rel (0) target = $region17
    $region16: #{_lambda_.1} parent=1 // pred_region
      %s46 = ssub.s32 32768, 32768
      %47 = vsyncadd [#allocation5], %s46
      %s48 = sshll.u32 [#allocation6], 4
      %s49 = int_to_ptr.vmem [resolvable:$true] %s48
      %54 = dma.hbm_to_vmem [thread:$0]  %s3, 32768, %s49, [#allocation5], 512, 512, 32
    $region17: #{_lambda_.1} parent=1 // pred_fallthru
      _
    // Predicated region
    $region18: #{_lambda_.1} parent=1 // pred_check
      _
    $region19: #{_lambda_.1} parent=1 // pred_check_branch
      %56 = sbr.rel (0) target = $region21
    $region20: #{_lambda_.1} parent=1 // pred_region
      %s58 = ssub.s32 64, 64
      %59 = vsyncadd [#allocation8], %s58
      %s61 = sshll.u32 [#allocation7], 4
      %s62 = int_to_ptr.vmem [resolvable:$true] %s61
      %64 = dma.hbm_to_vmem [thread:$0]  %s4, 64, %s62, [#allocation8]
    $region21: #{_lambda_.1} parent=1 // pred_fallthru
      _
    // Predicated region
    $region22: #{_lambda_.1} parent=1 // pred_check
      _
    $region23: #{_lambda_.1} parent=1 // pred_check_branch
      %66 = sbr.rel (0) target = $region25
    $region24: #{_lambda_.1} parent=1 // pred_region
      %s68 = ssub.s32 40960, 40960
      %69 = vsyncadd [#allocation8], %s68
      %s70 = sshll.u32 [#allocation9], 4
      %s71 = int_to_ptr.vmem [resolvable:$true] %s70
      %76 = dma.hbm_to_vmem [thread:$0]  %s5, 40960, %s71, [#allocation8], 640, 640, 40
    $region25: #{_lambda_.1} parent=1 // pred_fallthru
      _
    // Predicated region
    $region26: #{_lambda_.1} parent=1 // pred_check
      _
    $region27: #{_lambda_.1} parent=1 // pred_check_branch
      %78 = sbr.rel (0) target = $region29
    $region28: #{_lambda_.1} parent=1 // pred_region
      %s80 = ssub.s32 80, 80
      %81 = vsyncadd [#allocation11], %s80
      %s83 = sshll.u32 [#allocation10], 4
      %s84 = int_to_ptr.vmem [resolvable:$true] %s83
      %86 = dma.hbm_to_vmem [thread:$0]  %s6, 80, %s84, [#allocation11]
    $region29: #{_lambda_.1} parent=1 // pred_fallthru
      _
    // Predicated region
    $region30: #{_lambda_.1} parent=1 // pred_check
      _
    $region31: #{_lambda_.1} parent=1 // pred_check_branch
      %88 = sbr.rel (0) target = $region33
    $region32: #{_lambda_.1} parent=1 // pred_region
      %s90 = ssub.s32 10240, 10240
      %91 = vsyncadd [#allocation11], %s90
      %s92 = sshll.u32 [#allocation12], 4
      %s93 = int_to_ptr.vmem [resolvable:$true] %s92
      %98 = dma.hbm_to_vmem [thread:$0]  %s7, 10240, %s93, [#allocation11], 128, 128, 8
    $region33: #{_lambda_.1} parent=1 // pred_fallthru
      _
    // Predicated region
    $region34: #{_lambda_.1} parent=1 // pred_check
      _
    $region35: #{_lambda_.1} parent=1 // pred_check_branch
      %100 = sbr.rel (0) target = $region37
    $region36: #{_lambda_.1} parent=1 // pred_region
      %s102 = ssub.s32 16, 16
      %103 = vsyncadd [#allocation14], %s102
      %s105 = sshll.u32 [#allocation13], 4
      %s106 = int_to_ptr.vmem [resolvable:$true] %s105
      %108 = dma.hbm_to_vmem [thread:$0]  %s8, 16, %s106, [#allocation14]
    $region37: #{_lambda_.1} parent=1 // pred_fallthru
      _
    // Predicated region
    $region38: #{_lambda_.1} parent=1 // pred_check
      _
    $region39: #{_lambda_.1} parent=1 // pred_check_branch
      %110 = sbr.rel (0) target = $region41
    $region40: #{_lambda_.1} parent=1 // pred_region
      %111 = dma.done [#allocation3], 16384
    $region41: #{_lambda_.1} parent=1 // pred_fallthru
      _
    // Predicated region
    $region42: #{_lambda_.1} parent=1 // pred_check
      _
    $region43: #{_lambda_.1} parent=1 // pred_check_branch
      %113 = sbr.rel (0) target = $region45
    $region44: #{_lambda_.1} parent=1 // pred_region
      %114 = dma.done [#allocation5], 64
    $region45: #{_lambda_.1} parent=1 // pred_fallthru
      _
    // Predicated region
    $region46: #{_lambda_.1} parent=1 // pred_check
      _
    $region47: #{_lambda_.1} parent=1 // pred_check_branch
      %116 = sbr.rel (0) target = $region49
    $region48: #{_lambda_.1} parent=1 // pred_region
      %117 = dma.done [#allocation5], 32768
    $region49: #{_lambda_.1} parent=1 // pred_fallthru
      _
    // Predicated region
    $region50: #{_lambda_.1} parent=1 // pred_check
      _
    $region51: #{_lambda_.1} parent=1 // pred_check_branch
      %119 = sbr.rel (0) target = $region53
    $region52: #{_lambda_.1} parent=1 // pred_region
      %120 = dma.done [#allocation8], 64
    $region53: #{_lambda_.1} parent=1 // pred_fallthru
      _
    // Predicated region
    $region54: #{_lambda_.1} parent=1 // pred_check
      _
    $region55: #{_lambda_.1} parent=1 // pred_check_branch
      %122 = sbr.rel (0) target = $region57
    $region56: #{_lambda_.1} parent=1 // pred_region
      %123 = dma.done [#allocation8], 40960
    $region57: #{_lambda_.1} parent=1 // pred_fallthru
      _
    // Predicated region
    $region58: #{_lambda_.1} parent=1 // pred_check
      _
    $region59: #{_lambda_.1} parent=1 // pred_check_branch
      %125 = sbr.rel (0) target = $region61
    $region60: #{_lambda_.1} parent=1 // pred_region
      %126 = dma.done [#allocation11], 80
    $region61: #{_lambda_.1} parent=1 // pred_fallthru
      _
    // Predicated region
    $region62: #{_lambda_.1} parent=1 // pred_check
      _
    $region63: #{_lambda_.1} parent=1 // pred_check_branch
      %128 = sbr.rel (0) target = $region65
    $region64: #{_lambda_.1} parent=1 // pred_region
      %129 = dma.done [#allocation11], 10240
    $region65: #{_lambda_.1} parent=1 // pred_fallthru
      _
    // Predicated region
    $region66: #{_lambda_.1} parent=1 // pred_check
      _
    $region67: #{_lambda_.1} parent=1 // pred_check_branch
      %131 = sbr.rel (0) target = $region69
    $region68: #{_lambda_.1} parent=1 // pred_region
      %132 = dma.done [#allocation14], 16
    $region69: #{_lambda_.1} parent=1 // pred_fallthru
      _
    %v133 = vld [vmem:[%s0] sm:$0xff]
    %v134 = vld [vmem:[%s0 + $0x8] sm:$0xff]
    %v135 = vld [vmem:[#allocation2] sm:$0xff]
    %v136 = vld [vmem:[#allocation2 + $0x8] sm:$0xff]
    %v137 = vld [vmem:[#allocation2 + $0x10] sm:$0xff]
    %v138 = vld [vmem:[#allocation2 + $0x18] sm:$0xff]
    %v139 = vld [vmem:[#allocation2 + $0x20] sm:$0xff]
    %v140 = vld [vmem:[#allocation2 + $0x28] sm:$0xff]
    %v141 = vld [vmem:[#allocation2 + $0x30] sm:$0xff]
    %v142 = vld [vmem:[#allocation2 + $0x38] sm:$0xff]
    %v143 = vld [vmem:[#allocation2 + $0x40] sm:$0xff]
    %v144 = vld [vmem:[#allocation2 + $0x48] sm:$0xff]
    %v145 = vld [vmem:[#allocation2 + $0x50] sm:$0xff]
    %v146 = vld [vmem:[#allocation2 + $0x58] sm:$0xff]
    %v147 = vld [vmem:[#allocation2 + $0x60] sm:$0xff]
    %v148 = vld [vmem:[#allocation2 + $0x68] sm:$0xff]
    %v149 = vld [vmem:[#allocation2 + $0x70] sm:$0xff]
    %v150 = vld [vmem:[#allocation2 + $0x78] sm:$0xff]
    %v151 = vld [vmem:[#allocation2 + $0x80] sm:$0xff]
    %v152 = vld [vmem:[#allocation2 + $0x88] sm:$0xff]
    %v153 = vld [vmem:[#allocation2 + $0x90] sm:$0xff]
    %v154 = vld [vmem:[#allocation2 + $0x98] sm:$0xff]
    %v155 = vld [vmem:[#allocation2 + $0xa0] sm:$0xff]
    %v156 = vld [vmem:[#allocation2 + $0xa8] sm:$0xff]
    %v157 = vld [vmem:[#allocation2 + $0xb0] sm:$0xff]
    %v158 = vld [vmem:[#allocation2 + $0xb8] sm:$0xff]
    %v159 = vld [vmem:[#allocation2 + $0xc0] sm:$0xff]
    %v160 = vld [vmem:[#allocation2 + $0xc8] sm:$0xff]
    %v161 = vld [vmem:[#allocation2 + $0xd0] sm:$0xff]
    %v162 = vld [vmem:[#allocation2 + $0xd8] sm:$0xff]
    %v163 = vld [vmem:[#allocation2 + $0xe0] sm:$0xff]
    %v164 = vld [vmem:[#allocation2 + $0xe8] sm:$0xff]
    %v165 = vld [vmem:[#allocation2 + $0xf0] sm:$0xff]
    %v166 = vld [vmem:[#allocation2 + $0xf8] sm:$0xff]
    %v167 = vld [vmem:[#allocation2 + $0x100] sm:$0xff]
    %v168 = vld [vmem:[#allocation2 + $0x108] sm:$0xff]
    %v169 = vld [vmem:[#allocation2 + $0x110] sm:$0xff]
    %v170 = vld [vmem:[#allocation2 + $0x118] sm:$0xff]
    %v171 = vld [vmem:[#allocation2 + $0x120] sm:$0xff]
    %v172 = vld [vmem:[#allocation2 + $0x128] sm:$0xff]
    %v173 = vld [vmem:[#allocation2 + $0x130] sm:$0xff]
    %v174 = vld [vmem:[#allocation2 + $0x138] sm:$0xff]
    %v175 = vld [vmem:[#allocation2 + $0x140] sm:$0xff]
    %v176 = vld [vmem:[#allocation2 + $0x148] sm:$0xff]
    %v177 = vld [vmem:[#allocation2 + $0x150] sm:$0xff]
    %v178 = vld [vmem:[#allocation2 + $0x158] sm:$0xff]
    %v179 = vld [vmem:[#allocation2 + $0x160] sm:$0xff]
    %v180 = vld [vmem:[#allocation2 + $0x168] sm:$0xff]
    %v181 = vld [vmem:[#allocation2 + $0x170] sm:$0xff]
    %v182 = vld [vmem:[#allocation2 + $0x178] sm:$0xff]
    %v183 = vld [vmem:[#allocation2 + $0x180] sm:$0xff]
    %v184 = vld [vmem:[#allocation2 + $0x188] sm:$0xff]
    %v185 = vld [vmem:[#allocation2 + $0x190] sm:$0xff]
    %v186 = vld [vmem:[#allocation2 + $0x198] sm:$0xff]
    %v187 = vld [vmem:[#allocation2 + $0x1a0] sm:$0xff]
    %v188 = vld [vmem:[#allocation2 + $0x1a8] sm:$0xff]
    %v189 = vld [vmem:[#allocation2 + $0x1b0] sm:$0xff]
    %v190 = vld [vmem:[#allocation2 + $0x1b8] sm:$0xff]
    %v191 = vld [vmem:[#allocation2 + $0x1c0] sm:$0xff]
    %v192 = vld [vmem:[#allocation2 + $0x1c8] sm:$0xff]
    %v193 = vld [vmem:[#allocation2 + $0x1d0] sm:$0xff]
    %v194 = vld [vmem:[#allocation2 + $0x1d8] sm:$0xff]
    %v195 = vld [vmem:[#allocation2 + $0x1e0] sm:$0xff]
    %v196 = vld [vmem:[#allocation2 + $0x1e8] sm:$0xff]
    %v197 = vld [vmem:[#allocation2 + $0x1f0] sm:$0xff]
    %v198 = vld [vmem:[#allocation2 + $0x1f8] sm:$0xff]
    %v199 = vld [vmem:[#allocation2 + $0x200] sm:$0xff]
    %v200 = vld [vmem:[#allocation2 + $0x208] sm:$0xff]
    %v201 = vld [vmem:[#allocation2 + $0x210] sm:$0xff]
    %v202 = vld [vmem:[#allocation2 + $0x218] sm:$0xff]
    %v203 = vld [vmem:[#allocation2 + $0x220] sm:$0xff]
    %v204 = vld [vmem:[#allocation2 + $0x228] sm:$0xff]
    %v205 = vld [vmem:[#allocation2 + $0x230] sm:$0xff]
    %v206 = vld [vmem:[#allocation2 + $0x238] sm:$0xff]
    %v207 = vld [vmem:[#allocation2 + $0x240] sm:$0xff]
    %v208 = vld [vmem:[#allocation2 + $0x248] sm:$0xff]
    %v209 = vld [vmem:[#allocation2 + $0x250] sm:$0xff]
    %v210 = vld [vmem:[#allocation2 + $0x258] sm:$0xff]
    %v211 = vld [vmem:[#allocation2 + $0x260] sm:$0xff]
    %v212 = vld [vmem:[#allocation2 + $0x268] sm:$0xff]
    %v213 = vld [vmem:[#allocation2 + $0x270] sm:$0xff]
    %v214 = vld [vmem:[#allocation2 + $0x278] sm:$0xff]
    %v215 = vld [vmem:[#allocation2 + $0x280] sm:$0xff]
    %v216 = vld [vmem:[#allocation2 + $0x288] sm:$0xff]
    %v217 = vld [vmem:[#allocation2 + $0x290] sm:$0xff]
    %v218 = vld [vmem:[#allocation2 + $0x298] sm:$0xff]
    %v219 = vld [vmem:[#allocation2 + $0x2a0] sm:$0xff]
    %v220 = vld [vmem:[#allocation2 + $0x2a8] sm:$0xff]
    %v221 = vld [vmem:[#allocation2 + $0x2b0] sm:$0xff]
    %v222 = vld [vmem:[#allocation2 + $0x2b8] sm:$0xff]
    %v223 = vld [vmem:[#allocation2 + $0x2c0] sm:$0xff]
    %v224 = vld [vmem:[#allocation2 + $0x2c8] sm:$0xff]
    %v225 = vld [vmem:[#allocation2 + $0x2d0] sm:$0xff]
    %v226 = vld [vmem:[#allocation2 + $0x2d8] sm:$0xff]
    %v227 = vld [vmem:[#allocation2 + $0x2e0] sm:$0xff]
    %v228 = vld [vmem:[#allocation2 + $0x2e8] sm:$0xff]
    %v229 = vld [vmem:[#allocation2 + $0x2f0] sm:$0xff]
    %v230 = vld [vmem:[#allocation2 + $0x2f8] sm:$0xff]
    %v231 = vld [vmem:[#allocation2 + $0x300] sm:$0xff]
    %v232 = vld [vmem:[#allocation2 + $0x308] sm:$0xff]
    %v233 = vld [vmem:[#allocation2 + $0x310] sm:$0xff]
    %v234 = vld [vmem:[#allocation2 + $0x318] sm:$0xff]
    %v235 = vld [vmem:[#allocation2 + $0x320] sm:$0xff]
    %v236 = vld [vmem:[#allocation2 + $0x328] sm:$0xff]
    %v237 = vld [vmem:[#allocation2 + $0x330] sm:$0xff]
    %v238 = vld [vmem:[#allocation2 + $0x338] sm:$0xff]
    %v239 = vld [vmem:[#allocation2 + $0x340] sm:$0xff]
    %v240 = vld [vmem:[#allocation2 + $0x348] sm:$0xff]
    %v241 = vld [vmem:[#allocation2 + $0x350] sm:$0xff]
    %v242 = vld [vmem:[#allocation2 + $0x358] sm:$0xff]
    %v243 = vld [vmem:[#allocation2 + $0x360] sm:$0xff]
    %v244 = vld [vmem:[#allocation2 + $0x368] sm:$0xff]
    %v245 = vld [vmem:[#allocation2 + $0x370] sm:$0xff]
    %v246 = vld [vmem:[#allocation2 + $0x378] sm:$0xff]
    %v247 = vld [vmem:[#allocation2 + $0x380] sm:$0xff]
    %v248 = vld [vmem:[#allocation2 + $0x388] sm:$0xff]
    %v249 = vld [vmem:[#allocation2 + $0x390] sm:$0xff]
    %v250 = vld [vmem:[#allocation2 + $0x398] sm:$0xff]
    %v251 = vld [vmem:[#allocation2 + $0x3a0] sm:$0xff]
    %v252 = vld [vmem:[#allocation2 + $0x3a8] sm:$0xff]
    %v253 = vld [vmem:[#allocation2 + $0x3b0] sm:$0xff]
    %v254 = vld [vmem:[#allocation2 + $0x3b8] sm:$0xff]
    %v255 = vld [vmem:[#allocation2 + $0x3c0] sm:$0xff]
    %v256 = vld [vmem:[#allocation2 + $0x3c8] sm:$0xff]
    %v257 = vld [vmem:[#allocation2 + $0x3d0] sm:$0xff]
    %v258 = vld [vmem:[#allocation2 + $0x3d8] sm:$0xff]
    %v259 = vld [vmem:[#allocation2 + $0x3e0] sm:$0xff]
    %v260 = vld [vmem:[#allocation2 + $0x3e8] sm:$0xff]
    %v261 = vld [vmem:[#allocation2 + $0x3f0] sm:$0xff]
    %v262 = vld [vmem:[#allocation2 + $0x3f8] sm:$0xff]
    %v263 = vld [vmem:[#allocation4] sm:$0xf]
    %v265 = vlaneseq
    %v266 = vshrl.u32 %v265, 7
    %v267 = vsub.s32 0, %v266
    %v268 = vrot.slane %v263, %v267
    %v269 = vlaneseq
    %v270 = vshrl.u32 %v269, 7
    %v271 = vsub.s32 1, %v270
    %v272 = vrot.slane %v263, %v271
    %v273 = vlaneseq
    %v274 = vshrl.u32 %v273, 7
    %v275 = vsub.s32 2, %v274
    %v276 = vrot.slane %v263, %v275
    %v277 = vlaneseq
    %v278 = vshrl.u32 %v277, 7
    %v279 = vsub.s32 3, %v278
    %v280 = vrot.slane %v263, %v279
    %285 = vmatprep.subr.mxu0 %v136
    %286 = vmatpush1.msra.mxu0 %v135
    %287 = vmatprep.subr.mxu0 %v140
    %288 = vmatpush1.msra.mxu0 %v139
    %289 = vmatprep.subr.mxu0 %v144
    %290 = vmatpush1.msra.mxu0 %v143
    %291 = vmatprep.subr.mxu0 %v148
    %292 = vmatpush1.msra.mxu0 %v147
    %293 = vmatprep.subr.mxu0 %v152
    %294 = vmatpush1.msra.mxu0 %v151
    %295 = vmatprep.subr.mxu0 %v156
    %296 = vmatpush1.msra.mxu0 %v155
    %297 = vmatprep.subr.mxu0 %v160
    %298 = vmatpush1.msra.mxu0 %v159
    %299 = vmatprep.subr.mxu0 %v164
    %300 = vmatpush1.msra.mxu0 %v163
    %301 = vmatprep.subr.mxu0 %v168
    %302 = vmatpush1.msra.mxu0 %v167
    %303 = vmatprep.subr.mxu0 %v172
    %304 = vmatpush1.msra.mxu0 %v171
    %305 = vmatprep.subr.mxu0 %v176
    %306 = vmatpush1.msra.mxu0 %v175
    %307 = vmatprep.subr.mxu0 %v180
    %308 = vmatpush1.msra.mxu0 %v179
    %309 = vmatprep.subr.mxu0 %v184
    %310 = vmatpush1.msra.mxu0 %v183
    %311 = vmatprep.subr.mxu0 %v188
    %312 = vmatpush1.msra.mxu0 %v187
    %313 = vmatprep.subr.mxu0 %v192
    %314 = vmatpush1.msra.mxu0 %v191
    %315 = vmatprep.subr.mxu0 %v196
    %316 = vmatpush1.msra.mxu0 %v195
    %317 = vmatprep.subr.mxu0 %v200
    %318 = vmatpush1.msra.mxu0 %v199
    %319 = vmatprep.subr.mxu0 %v204
    %320 = vmatpush1.msra.mxu0 %v203
    %321 = vmatprep.subr.mxu0 %v208
    %322 = vmatpush1.msra.mxu0 %v207
    %323 = vmatprep.subr.mxu0 %v212
    %324 = vmatpush1.msra.mxu0 %v211
    %325 = vmatprep.subr.mxu0 %v216
    %326 = vmatpush1.msra.mxu0 %v215
    %327 = vmatprep.subr.mxu0 %v220
    %328 = vmatpush1.msra.mxu0 %v219
    %329 = vmatprep.subr.mxu0 %v224
    %330 = vmatpush1.msra.mxu0 %v223
    %331 = vmatprep.subr.mxu0 %v228
    %332 = vmatpush1.msra.mxu0 %v227
    %333 = vmatprep.subr.mxu0 %v232
    %334 = vmatpush1.msra.mxu0 %v231
    %335 = vmatprep.subr.mxu0 %v236
    %336 = vmatpush1.msra.mxu0 %v235
    %337 = vmatprep.subr.mxu0 %v240
    %338 = vmatpush1.msra.mxu0 %v239
    %339 = vmatprep.subr.mxu0 %v244
    %340 = vmatpush1.msra.mxu0 %v243
    %341 = vmatprep.subr.mxu0 %v248
    %342 = vmatpush1.msra.mxu0 %v247
    %343 = vmatprep.subr.mxu0 %v252
    %344 = vmatpush1.msra.mxu0 %v251
    %345 = vmatprep.subr.mxu0 %v256
    %346 = vmatpush1.msra.mxu0 %v255
    %347 = vmatprep.subr.mxu0 %v260
    %348 = vmatpush1.msra.mxu0 %v259
    %349 = vmatprep.mubr.f32.mxu0 %v134
    %350 = vmatmul.mubr.f32.gmra.mrb[0].mxu0 %v133
    %v351 = vpop.f32.mrb[0].mxu0
    %v352 = vadd.f32 %v268, %v351
    %v353 = vpop.f32.mrb[0].mxu0
    %v354 = vadd.f32 %v272, %v353
    %355 = vdwg.mxu0
    %356 = vmatprep.subr.mxu0 %v138
    %357 = vmatpush1.msra.mxu0 %v137
    %358 = vmatprep.subr.mxu0 %v142
    %359 = vmatpush1.msra.mxu0 %v141
    %360 = vmatprep.subr.mxu0 %v146
    %361 = vmatpush1.msra.mxu0 %v145
    %362 = vmatprep.subr.mxu0 %v150
    %363 = vmatpush1.msra.mxu0 %v149
    %364 = vmatprep.subr.mxu0 %v154
    %365 = vmatpush1.msra.mxu0 %v153
    %366 = vmatprep.subr.mxu0 %v158
    %367 = vmatpush1.msra.mxu0 %v157
    %368 = vmatprep.subr.mxu0 %v162
    %369 = vmatpush1.msra.mxu0 %v161
    %370 = vmatprep.subr.mxu0 %v166
    %371 = vmatpush1.msra.mxu0 %v165
    %372 = vmatprep.subr.mxu0 %v170
    %373 = vmatpush1.msra.mxu0 %v169
    %374 = vmatprep.subr.mxu0 %v174
    %375 = vmatpush1.msra.mxu0 %v173
    %376 = vmatprep.subr.mxu0 %v178
    %377 = vmatpush1.msra.mxu0 %v177
    %378 = vmatprep.subr.mxu0 %v182
    %379 = vmatpush1.msra.mxu0 %v181
    %380 = vmatprep.subr.mxu0 %v186
    %381 = vmatpush1.msra.mxu0 %v185
    %382 = vmatprep.subr.mxu0 %v190
    %383 = vmatpush1.msra.mxu0 %v189
    %384 = vmatprep.subr.mxu0 %v194
    %385 = vmatpush1.msra.mxu0 %v193
    %386 = vmatprep.subr.mxu0 %v198
    %387 = vmatpush1.msra.mxu0 %v197
    %388 = vmatprep.subr.mxu0 %v202
    %389 = vmatpush1.msra.mxu0 %v201
    %390 = vmatprep.subr.mxu0 %v206
    %391 = vmatpush1.msra.mxu0 %v205
    %392 = vmatprep.subr.mxu0 %v210
    %393 = vmatpush1.msra.mxu0 %v209
    %394 = vmatprep.subr.mxu0 %v214
    %395 = vmatpush1.msra.mxu0 %v213
    %396 = vmatprep.subr.mxu0 %v218
    %397 = vmatpush1.msra.mxu0 %v217
    %398 = vmatprep.subr.mxu0 %v222
    %399 = vmatpush1.msra.mxu0 %v221
    %400 = vmatprep.subr.mxu0 %v226
    %401 = vmatpush1.msra.mxu0 %v225
    %402 = vmatprep.subr.mxu0 %v230
    %403 = vmatpush1.msra.mxu0 %v229
    %404 = vmatprep.subr.mxu0 %v234
    %405 = vmatpush1.msra.mxu0 %v233
    %406 = vmatprep.subr.mxu0 %v238
    %407 = vmatpush1.msra.mxu0 %v237
    %408 = vmatprep.subr.mxu0 %v242
    %409 = vmatpush1.msra.mxu0 %v241
    %410 = vmatprep.subr.mxu0 %v246
    %411 = vmatpush1.msra.mxu0 %v245
    %412 = vmatprep.subr.mxu0 %v250
    %413 = vmatpush1.msra.mxu0 %v249
    %414 = vmatprep.subr.mxu0 %v254
    %415 = vmatpush1.msra.mxu0 %v253
    %416 = vmatprep.subr.mxu0 %v258
    %417 = vmatpush1.msra.mxu0 %v257
    %418 = vmatprep.subr.mxu0 %v262
    %419 = vmatpush1.msra.mxu0 %v261
    %420 = vmatprep.mubr.f32.mxu0 %v134
    %421 = vmatmul.mubr.f32.gmra.mrb[0].mxu0 %v133
    %v422 = vpop.f32.mrb[0].mxu0
    %v423 = vadd.f32 %v276, %v422
    %v424 = vpop.f32.mrb[0].mxu0
    %v425 = vadd.f32 %v280, %v424
    %426 = vdwg.mxu0
    %v427 = vmax.f32 %v352, 0.0
    %v428 = vmax.f32 %v354, 0.0
    %v429 = vmax.f32 %v423, 0.0
    %v430 = vmax.f32 %v425, 0.0
    %v431 = vld [vmem:[#allocation6] sm:$0xff]
    %v432 = vld [vmem:[#allocation6 + $0x8] sm:$0xff]
    %v433 = vld [vmem:[#allocation6 + $0x10] sm:$0xff]
    %v434 = vld [vmem:[#allocation6 + $0x18] sm:$0xff]
    %v435 = vld [vmem:[#allocation6 + $0x20] sm:$0xff]
    %v436 = vld [vmem:[#allocation6 + $0x28] sm:$0xff]
    %v437 = vld [vmem:[#allocation6 + $0x30] sm:$0xff]
    %v438 = vld [vmem:[#allocation6 + $0x38] sm:$0xff]
    %v439 = vld [vmem:[#allocation6 + $0x40] sm:$0xff]
    %v440 = vld [vmem:[#allocation6 + $0x48] sm:$0xff]
    %v441 = vld [vmem:[#allocation6 + $0x50] sm:$0xff]
    %v442 = vld [vmem:[#allocation6 + $0x58] sm:$0xff]
    %v443 = vld [vmem:[#allocation6 + $0x60] sm:$0xff]
    %v444 = vld [vmem:[#allocation6 + $0x68] sm:$0xff]
    %v445 = vld [vmem:[#allocation6 + $0x70] sm:$0xff]
    %v446 = vld [vmem:[#allocation6 + $0x78] sm:$0xff]
    %v447 = vld [vmem:[#allocation6 + $0x80] sm:$0xff]
    %v448 = vld [vmem:[#allocation6 + $0x88] sm:$0xff]
    %v449 = vld [vmem:[#allocation6 + $0x90] sm:$0xff]
    %v450 = vld [vmem:[#allocation6 + $0x98] sm:$0xff]
    %v451 = vld [vmem:[#allocation6 + $0xa0] sm:$0xff]
    %v452 = vld [vmem:[#allocation6 + $0xa8] sm:$0xff]
    %v453 = vld [vmem:[#allocation6 + $0xb0] sm:$0xff]
    %v454 = vld [vmem:[#allocation6 + $0xb8] sm:$0xff]
    %v455 = vld [vmem:[#allocation6 + $0xc0] sm:$0xff]
    %v456 = vld [vmem:[#allocation6 + $0xc8] sm:$0xff]
    %v457 = vld [vmem:[#allocation6 + $0xd0] sm:$0xff]
    %v458 = vld [vmem:[#allocation6 + $0xd8] sm:$0xff]
    %v459 = vld [vmem:[#allocation6 + $0xe0] sm:$0xff]
    %v460 = vld [vmem:[#allocation6 + $0xe8] sm:$0xff]
    %v461 = vld [vmem:[#allocation6 + $0xf0] sm:$0xff]
    %v462 = vld [vmem:[#allocation6 + $0xf8] sm:$0xff]
    %v463 = vld [vmem:[#allocation6 + $0x100] sm:$0xff]
    %v464 = vld [vmem:[#allocation6 + $0x108] sm:$0xff]
    %v465 = vld [vmem:[#allocation6 + $0x110] sm:$0xff]
    %v466 = vld [vmem:[#allocation6 + $0x118] sm:$0xff]
    %v467 = vld [vmem:[#allocation6 + $0x120] sm:$0xff]
    %v468 = vld [vmem:[#allocation6 + $0x128] sm:$0xff]
    %v469 = vld [vmem:[#allocation6 + $0x130] sm:$0xff]
    %v470 = vld [vmem:[#allocation6 + $0x138] sm:$0xff]
    %v471 = vld [vmem:[#allocation6 + $0x140] sm:$0xff]
    %v472 = vld [vmem:[#allocation6 + $0x148] sm:$0xff]
    %v473 = vld [vmem:[#allocation6 + $0x150] sm:$0xff]
    %v474 = vld [vmem:[#allocation6 + $0x158] sm:$0xff]
    %v475 = vld [vmem:[#allocation6 + $0x160] sm:$0xff]
    %v476 = vld [vmem:[#allocation6 + $0x168] sm:$0xff]
    %v477 = vld [vmem:[#allocation6 + $0x170] sm:$0xff]
    %v478 = vld [vmem:[#allocation6 + $0x178] sm:$0xff]
    %v479 = vld [vmem:[#allocation6 + $0x180] sm:$0xff]
    %v480 = vld [vmem:[#allocation6 + $0x188] sm:$0xff]
    %v481 = vld [vmem:[#allocation6 + $0x190] sm:$0xff]
    %v482 = vld [vmem:[#allocation6 + $0x198] sm:$0xff]
    %v483 = vld [vmem:[#allocation6 + $0x1a0] sm:$0xff]
    %v484 = vld [vmem:[#allocation6 + $0x1a8] sm:$0xff]
    %v485 = vld [vmem:[#allocation6 + $0x1b0] sm:$0xff]
    %v486 = vld [vmem:[#allocation6 + $0x1b8] sm:$0xff]
    %v487 = vld [vmem:[#allocation6 + $0x1c0] sm:$0xff]
    %v488 = vld [vmem:[#allocation6 + $0x1c8] sm:$0xff]
    %v489 = vld [vmem:[#allocation6 + $0x1d0] sm:$0xff]
    %v490 = vld [vmem:[#allocation6 + $0x1d8] sm:$0xff]
    %v491 = vld [vmem:[#allocation6 + $0x1e0] sm:$0xff]
    %v492 = vld [vmem:[#allocation6 + $0x1e8] sm:$0xff]
    %v493 = vld [vmem:[#allocation6 + $0x1f0] sm:$0xff]
    %v494 = vld [vmem:[#allocation6 + $0x1f8] sm:$0xff]
    %v495 = vld [vmem:[#allocation6 + $0x200] sm:$0xff]
    %v496 = vld [vmem:[#allocation6 + $0x208] sm:$0xff]
    %v497 = vld [vmem:[#allocation6 + $0x210] sm:$0xff]
    %v498 = vld [vmem:[#allocation6 + $0x218] sm:$0xff]
    %v499 = vld [vmem:[#allocation6 + $0x220] sm:$0xff]
    %v500 = vld [vmem:[#allocation6 + $0x228] sm:$0xff]
    %v501 = vld [vmem:[#allocation6 + $0x230] sm:$0xff]
    %v502 = vld [vmem:[#allocation6 + $0x238] sm:$0xff]
    %v503 = vld [vmem:[#allocation6 + $0x240] sm:$0xff]
    %v504 = vld [vmem:[#allocation6 + $0x248] sm:$0xff]
    %v505 = vld [vmem:[#allocation6 + $0x250] sm:$0xff]
    %v506 = vld [vmem:[#allocation6 + $0x258] sm:$0xff]
    %v507 = vld [vmem:[#allocation6 + $0x260] sm:$0xff]
    %v508 = vld [vmem:[#allocation6 + $0x268] sm:$0xff]
    %v509 = vld [vmem:[#allocation6 + $0x270] sm:$0xff]
    %v510 = vld [vmem:[#allocation6 + $0x278] sm:$0xff]
    %v511 = vld [vmem:[#allocation6 + $0x280] sm:$0xff]
    %v512 = vld [vmem:[#allocation6 + $0x288] sm:$0xff]
    %v513 = vld [vmem:[#allocation6 + $0x290] sm:$0xff]
    %v514 = vld [vmem:[#allocation6 + $0x298] sm:$0xff]
    %v515 = vld [vmem:[#allocation6 + $0x2a0] sm:$0xff]
    %v516 = vld [vmem:[#allocation6 + $0x2a8] sm:$0xff]
    %v517 = vld [vmem:[#allocation6 + $0x2b0] sm:$0xff]
    %v518 = vld [vmem:[#allocation6 + $0x2b8] sm:$0xff]
    %v519 = vld [vmem:[#allocation6 + $0x2c0] sm:$0xff]
    %v520 = vld [vmem:[#allocation6 + $0x2c8] sm:$0xff]
    %v521 = vld [vmem:[#allocation6 + $0x2d0] sm:$0xff]
    %v522 = vld [vmem:[#allocation6 + $0x2d8] sm:$0xff]
    %v523 = vld [vmem:[#allocation6 + $0x2e0] sm:$0xff]
    %v524 = vld [vmem:[#allocation6 + $0x2e8] sm:$0xff]
    %v525 = vld [vmem:[#allocation6 + $0x2f0] sm:$0xff]
    %v526 = vld [vmem:[#allocation6 + $0x2f8] sm:$0xff]
    %v527 = vld [vmem:[#allocation6 + $0x300] sm:$0xff]
    %v528 = vld [vmem:[#allocation6 + $0x308] sm:$0xff]
    %v529 = vld [vmem:[#allocation6 + $0x310] sm:$0xff]
    %v530 = vld [vmem:[#allocation6 + $0x318] sm:$0xff]
    %v531 = vld [vmem:[#allocation6 + $0x320] sm:$0xff]
    %v532 = vld [vmem:[#allocation6 + $0x328] sm:$0xff]
    %v533 = vld [vmem:[#allocation6 + $0x330] sm:$0xff]
    %v534 = vld [vmem:[#allocation6 + $0x338] sm:$0xff]
    %v535 = vld [vmem:[#allocation6 + $0x340] sm:$0xff]
    %v536 = vld [vmem:[#allocation6 + $0x348] sm:$0xff]
    %v537 = vld [vmem:[#allocation6 + $0x350] sm:$0xff]
    %v538 = vld [vmem:[#allocation6 + $0x358] sm:$0xff]
    %v539 = vld [vmem:[#allocation6 + $0x360] sm:$0xff]
    %v540 = vld [vmem:[#allocation6 + $0x368] sm:$0xff]
    %v541 = vld [vmem:[#allocation6 + $0x370] sm:$0xff]
    %v542 = vld [vmem:[#allocation6 + $0x378] sm:$0xff]
    %v543 = vld [vmem:[#allocation6 + $0x380] sm:$0xff]
    %v544 = vld [vmem:[#allocation6 + $0x388] sm:$0xff]
    %v545 = vld [vmem:[#allocation6 + $0x390] sm:$0xff]
    %v546 = vld [vmem:[#allocation6 + $0x398] sm:$0xff]
    %v547 = vld [vmem:[#allocation6 + $0x3a0] sm:$0xff]
    %v548 = vld [vmem:[#allocation6 + $0x3a8] sm:$0xff]
    %v549 = vld [vmem:[#allocation6 + $0x3b0] sm:$0xff]
    %v550 = vld [vmem:[#allocation6 + $0x3b8] sm:$0xff]
    %v551 = vld [vmem:[#allocation6 + $0x3c0] sm:$0xff]
    %v552 = vld [vmem:[#allocation6 + $0x3c8] sm:$0xff]
    %v553 = vld [vmem:[#allocation6 + $0x3d0] sm:$0xff]
    %v554 = vld [vmem:[#allocation6 + $0x3d8] sm:$0xff]
    %v555 = vld [vmem:[#allocation6 + $0x3e0] sm:$0xff]
    %v556 = vld [vmem:[#allocation6 + $0x3e8] sm:$0xff]
    %v557 = vld [vmem:[#allocation6 + $0x3f0] sm:$0xff]
    %v558 = vld [vmem:[#allocation6 + $0x3f8] sm:$0xff]
    %v559 = vld [vmem:[#allocation6 + $0x400] sm:$0xff]
    %v560 = vld [vmem:[#allocation6 + $0x408] sm:$0xff]
    %v561 = vld [vmem:[#allocation6 + $0x410] sm:$0xff]
    %v562 = vld [vmem:[#allocation6 + $0x418] sm:$0xff]
    %v563 = vld [vmem:[#allocation6 + $0x420] sm:$0xff]
    %v564 = vld [vmem:[#allocation6 + $0x428] sm:$0xff]
    %v565 = vld [vmem:[#allocation6 + $0x430] sm:$0xff]
    %v566 = vld [vmem:[#allocation6 + $0x438] sm:$0xff]
    %v567 = vld [vmem:[#allocation6 + $0x440] sm:$0xff]
    %v568 = vld [vmem:[#allocation6 + $0x448] sm:$0xff]
    %v569 = vld [vmem:[#allocation6 + $0x450] sm:$0xff]
    %v570 = vld [vmem:[#allocation6 + $0x458] sm:$0xff]
    %v571 = vld [vmem:[#allocation6 + $0x460] sm:$0xff]
    %v572 = vld [vmem:[#allocation6 + $0x468] sm:$0xff]
    %v573 = vld [vmem:[#allocation6 + $0x470] sm:$0xff]
    %v574 = vld [vmem:[#allocation6 + $0x478] sm:$0xff]
    %v575 = vld [vmem:[#allocation6 + $0x480] sm:$0xff]
    %v576 = vld [vmem:[#allocation6 + $0x488] sm:$0xff]
    %v577 = vld [vmem:[#allocation6 + $0x490] sm:$0xff]
    %v578 = vld [vmem:[#allocation6 + $0x498] sm:$0xff]
    %v579 = vld [vmem:[#allocation6 + $0x4a0] sm:$0xff]
    %v580 = vld [vmem:[#allocation6 + $0x4a8] sm:$0xff]
    %v581 = vld [vmem:[#allocation6 + $0x4b0] sm:$0xff]
    %v582 = vld [vmem:[#allocation6 + $0x4b8] sm:$0xff]
    %v583 = vld [vmem:[#allocation6 + $0x4c0] sm:$0xff]
    %v584 = vld [vmem:[#allocation6 + $0x4c8] sm:$0xff]
    %v585 = vld [vmem:[#allocation6 + $0x4d0] sm:$0xff]
    %v586 = vld [vmem:[#allocation6 + $0x4d8] sm:$0xff]
    %v587 = vld [vmem:[#allocation6 + $0x4e0] sm:$0xff]
    %v588 = vld [vmem:[#allocation6 + $0x4e8] sm:$0xff]
    %v589 = vld [vmem:[#allocation6 + $0x4f0] sm:$0xff]
    %v590 = vld [vmem:[#allocation6 + $0x4f8] sm:$0xff]
    %v591 = vld [vmem:[#allocation6 + $0x500] sm:$0xff]
    %v592 = vld [vmem:[#allocation6 + $0x508] sm:$0xff]
    %v593 = vld [vmem:[#allocation6 + $0x510] sm:$0xff]
    %v594 = vld [vmem:[#allocation6 + $0x518] sm:$0xff]
    %v595 = vld [vmem:[#allocation6 + $0x520] sm:$0xff]
    %v596 = vld [vmem:[#allocation6 + $0x528] sm:$0xff]
    %v597 = vld [vmem:[#allocation6 + $0x530] sm:$0xff]
    %v598 = vld [vmem:[#allocation6 + $0x538] sm:$0xff]
    %v599 = vld [vmem:[#allocation6 + $0x540] sm:$0xff]
    %v600 = vld [vmem:[#allocation6 + $0x548] sm:$0xff]
    %v601 = vld [vmem:[#allocation6 + $0x550] sm:$0xff]
    %v602 = vld [vmem:[#allocation6 + $0x558] sm:$0xff]
    %v603 = vld [vmem:[#allocation6 + $0x560] sm:$0xff]
    %v604 = vld [vmem:[#allocation6 + $0x568] sm:$0xff]
    %v605 = vld [vmem:[#allocation6 + $0x570] sm:$0xff]
    %v606 = vld [vmem:[#allocation6 + $0x578] sm:$0xff]
    %v607 = vld [vmem:[#allocation6 + $0x580] sm:$0xff]
    %v608 = vld [vmem:[#allocation6 + $0x588] sm:$0xff]
    %v609 = vld [vmem:[#allocation6 + $0x590] sm:$0xff]
    %v610 = vld [vmem:[#allocation6 + $0x598] sm:$0xff]
    %v611 = vld [vmem:[#allocation6 + $0x5a0] sm:$0xff]
    %v612 = vld [vmem:[#allocation6 + $0x5a8] sm:$0xff]
    %v613 = vld [vmem:[#allocation6 + $0x5b0] sm:$0xff]
    %v614 = vld [vmem:[#allocation6 + $0x5b8] sm:$0xff]
    %v615 = vld [vmem:[#allocation6 + $0x5c0] sm:$0xff]
    %v616 = vld [vmem:[#allocation6 + $0x5c8] sm:$0xff]
    %v617 = vld [vmem:[#allocation6 + $0x5d0] sm:$0xff]
    %v618 = vld [vmem:[#allocation6 + $0x5d8] sm:$0xff]
    %v619 = vld [vmem:[#allocation6 + $0x5e0] sm:$0xff]
    %v620 = vld [vmem:[#allocation6 + $0x5e8] sm:$0xff]
    %v621 = vld [vmem:[#allocation6 + $0x5f0] sm:$0xff]
    %v622 = vld [vmem:[#allocation6 + $0x5f8] sm:$0xff]
    %v623 = vld [vmem:[#allocation6 + $0x600] sm:$0xff]
    %v624 = vld [vmem:[#allocation6 + $0x608] sm:$0xff]
    %v625 = vld [vmem:[#allocation6 + $0x610] sm:$0xff]
    %v626 = vld [vmem:[#allocation6 + $0x618] sm:$0xff]
    %v627 = vld [vmem:[#allocation6 + $0x620] sm:$0xff]
    %v628 = vld [vmem:[#allocation6 + $0x628] sm:$0xff]
    %v629 = vld [vmem:[#allocation6 + $0x630] sm:$0xff]
    %v630 = vld [vmem:[#allocation6 + $0x638] sm:$0xff]
    %v631 = vld [vmem:[#allocation6 + $0x640] sm:$0xff]
    %v632 = vld [vmem:[#allocation6 + $0x648] sm:$0xff]
    %v633 = vld [vmem:[#allocation6 + $0x650] sm:$0xff]
    %v634 = vld [vmem:[#allocation6 + $0x658] sm:$0xff]
    %v635 = vld [vmem:[#allocation6 + $0x660] sm:$0xff]
    %v636 = vld [vmem:[#allocation6 + $0x668] sm:$0xff]
    %v637 = vld [vmem:[#allocation6 + $0x670] sm:$0xff]
    %v638 = vld [vmem:[#allocation6 + $0x678] sm:$0xff]
    %v639 = vld [vmem:[#allocation6 + $0x680] sm:$0xff]
    %v640 = vld [vmem:[#allocation6 + $0x688] sm:$0xff]
    %v641 = vld [vmem:[#allocation6 + $0x690] sm:$0xff]
    %v642 = vld [vmem:[#allocation6 + $0x698] sm:$0xff]
    %v643 = vld [vmem:[#allocation6 + $0x6a0] sm:$0xff]
    %v644 = vld [vmem:[#allocation6 + $0x6a8] sm:$0xff]
    %v645 = vld [vmem:[#allocation6 + $0x6b0] sm:$0xff]
    %v646 = vld [vmem:[#allocation6 + $0x6b8] sm:$0xff]
    %v647 = vld [vmem:[#allocation6 + $0x6c0] sm:$0xff]
    %v648 = vld [vmem:[#allocation6 + $0x6c8] sm:$0xff]
    %v649 = vld [vmem:[#allocation6 + $0x6d0] sm:$0xff]
    %v650 = vld [vmem:[#allocation6 + $0x6d8] sm:$0xff]
    %v651 = vld [vmem:[#allocation6 + $0x6e0] sm:$0xff]
    %v652 = vld [vmem:[#allocation6 + $0x6e8] sm:$0xff]
    %v653 = vld [vmem:[#allocation6 + $0x6f0] sm:$0xff]
    %v654 = vld [vmem:[#allocation6 + $0x6f8] sm:$0xff]
    %v655 = vld [vmem:[#allocation6 + $0x700] sm:$0xff]
    %v656 = vld [vmem:[#allocation6 + $0x708] sm:$0xff]
    %v657 = vld [vmem:[#allocation6 + $0x710] sm:$0xff]
    %v658 = vld [vmem:[#allocation6 + $0x718] sm:$0xff]
    %v659 = vld [vmem:[#allocation6 + $0x720] sm:$0xff]
    %v660 = vld [vmem:[#allocation6 + $0x728] sm:$0xff]
    %v661 = vld [vmem:[#allocation6 + $0x730] sm:$0xff]
    %v662 = vld [vmem:[#allocation6 + $0x738] sm:$0xff]
    %v663 = vld [vmem:[#allocation6 + $0x740] sm:$0xff]
    %v664 = vld [vmem:[#allocation6 + $0x748] sm:$0xff]
    %v665 = vld [vmem:[#allocation6 + $0x750] sm:$0xff]
    %v666 = vld [vmem:[#allocation6 + $0x758] sm:$0xff]
    %v667 = vld [vmem:[#allocation6 + $0x760] sm:$0xff]
    %v668 = vld [vmem:[#allocation6 + $0x768] sm:$0xff]
    %v669 = vld [vmem:[#allocation6 + $0x770] sm:$0xff]
    %v670 = vld [vmem:[#allocation6 + $0x778] sm:$0xff]
    %v671 = vld [vmem:[#allocation6 + $0x780] sm:$0xff]
    %v672 = vld [vmem:[#allocation6 + $0x788] sm:$0xff]
    %v673 = vld [vmem:[#allocation6 + $0x790] sm:$0xff]
    %v674 = vld [vmem:[#allocation6 + $0x798] sm:$0xff]
    %v675 = vld [vmem:[#allocation6 + $0x7a0] sm:$0xff]
    %v676 = vld [vmem:[#allocation6 + $0x7a8] sm:$0xff]
    %v677 = vld [vmem:[#allocation6 + $0x7b0] sm:$0xff]
    %v678 = vld [vmem:[#allocation6 + $0x7b8] sm:$0xff]
    %v679 = vld [vmem:[#allocation6 + $0x7c0] sm:$0xff]
    %v680 = vld [vmem:[#allocation6 + $0x7c8] sm:$0xff]
    %v681 = vld [vmem:[#allocation6 + $0x7d0] sm:$0xff]
    %v682 = vld [vmem:[#allocation6 + $0x7d8] sm:$0xff]
    %v683 = vld [vmem:[#allocation6 + $0x7e0] sm:$0xff]
    %v684 = vld [vmem:[#allocation6 + $0x7e8] sm:$0xff]
    %v685 = vld [vmem:[#allocation6 + $0x7f0] sm:$0xff]
    %v686 = vld [vmem:[#allocation6 + $0x7f8] sm:$0xff]
    %v687 = vld [vmem:[#allocation7] sm:$0xf]
    %v689 = vlaneseq
    %v690 = vshrl.u32 %v689, 7
    %v691 = vsub.s32 0, %v690
    %v692 = vrot.slane %v687, %v691
    %v693 = vlaneseq
    %v694 = vshrl.u32 %v693, 7
    %v695 = vsub.s32 1, %v694
    %v696 = vrot.slane %v687, %v695
    %v697 = vlaneseq
    %v698 = vshrl.u32 %v697, 7
    %v699 = vsub.s32 2, %v698
    %v700 = vrot.slane %v687, %v699
    %v701 = vlaneseq
    %v702 = vshrl.u32 %v701, 7
    %v703 = vsub.s32 3, %v702
    %v704 = vrot.slane %v687, %v703
    %709 = vmatprep.subr.mxu0 %v432
    %710 = vmatpush1.msra.mxu0 %v431
    %711 = vmatprep.subr.mxu0 %v436
    %712 = vmatpush1.msra.mxu0 %v435
    %713 = vmatprep.subr.mxu0 %v440
    %714 = vmatpush1.msra.mxu0 %v439
    %715 = vmatprep.subr.mxu0 %v444
    %716 = vmatpush1.msra.mxu0 %v443
    %717 = vmatprep.subr.mxu0 %v448
    %718 = vmatpush1.msra.mxu0 %v447
    %719 = vmatprep.subr.mxu0 %v452
    %720 = vmatpush1.msra.mxu0 %v451
    %721 = vmatprep.subr.mxu0 %v456
    %722 = vmatpush1.msra.mxu0 %v455
    %723 = vmatprep.subr.mxu0 %v460
    %724 = vmatpush1.msra.mxu0 %v459
    %725 = vmatprep.subr.mxu0 %v464
    %726 = vmatpush1.msra.mxu0 %v463
    %727 = vmatprep.subr.mxu0 %v468
    %728 = vmatpush1.msra.mxu0 %v467
    %729 = vmatprep.subr.mxu0 %v472
    %730 = vmatpush1.msra.mxu0 %v471
    %731 = vmatprep.subr.mxu0 %v476
    %732 = vmatpush1.msra.mxu0 %v475
    %733 = vmatprep.subr.mxu0 %v480
    %734 = vmatpush1.msra.mxu0 %v479
    %735 = vmatprep.subr.mxu0 %v484
    %736 = vmatpush1.msra.mxu0 %v483
    %737 = vmatprep.subr.mxu0 %v488
    %738 = vmatpush1.msra.mxu0 %v487
    %739 = vmatprep.subr.mxu0 %v492
    %740 = vmatpush1.msra.mxu0 %v491
    %741 = vmatprep.subr.mxu0 %v496
    %742 = vmatpush1.msra.mxu0 %v495
    %743 = vmatprep.subr.mxu0 %v500
    %744 = vmatpush1.msra.mxu0 %v499
    %745 = vmatprep.subr.mxu0 %v504
    %746 = vmatpush1.msra.mxu0 %v503
    %747 = vmatprep.subr.mxu0 %v508
    %748 = vmatpush1.msra.mxu0 %v507
    %749 = vmatprep.subr.mxu0 %v512
    %750 = vmatpush1.msra.mxu0 %v511
    %751 = vmatprep.subr.mxu0 %v516
    %752 = vmatpush1.msra.mxu0 %v515
    %753 = vmatprep.subr.mxu0 %v520
    %754 = vmatpush1.msra.mxu0 %v519
    %755 = vmatprep.subr.mxu0 %v524
    %756 = vmatpush1.msra.mxu0 %v523
    %757 = vmatprep.subr.mxu0 %v528
    %758 = vmatpush1.msra.mxu0 %v527
    %759 = vmatprep.subr.mxu0 %v532
    %760 = vmatpush1.msra.mxu0 %v531
    %761 = vmatprep.subr.mxu0 %v536
    %762 = vmatpush1.msra.mxu0 %v535
    %763 = vmatprep.subr.mxu0 %v540
    %764 = vmatpush1.msra.mxu0 %v539
    %765 = vmatprep.subr.mxu0 %v544
    %766 = vmatpush1.msra.mxu0 %v543
    %767 = vmatprep.subr.mxu0 %v548
    %768 = vmatpush1.msra.mxu0 %v547
    %769 = vmatprep.subr.mxu0 %v552
    %770 = vmatpush1.msra.mxu0 %v551
    %771 = vmatprep.subr.mxu0 %v556
    %772 = vmatpush1.msra.mxu0 %v555
    %773 = vmatprep.mubr.f32.mxu0 %v428
    %774 = vmatmul.mubr.f32.gmra.mrb[0].mxu0 %v427
    %v775 = vpop.f32.mrb[0].mxu0
    %v776 = vadd.f32 %v692, %v775
    %v777 = vpop.f32.mrb[0].mxu0
    %v778 = vadd.f32 %v696, %v777
    %779 = vdwg.mxu0
    %780 = vmatprep.subr.mxu0 %v560
    %781 = vmatpush1.msra.mxu0 %v559
    %782 = vmatprep.subr.mxu0 %v564
    %783 = vmatpush1.msra.mxu0 %v563
    %784 = vmatprep.subr.mxu0 %v568
    %785 = vmatpush1.msra.mxu0 %v567
    %786 = vmatprep.subr.mxu0 %v572
    %787 = vmatpush1.msra.mxu0 %v571
    %788 = vmatprep.subr.mxu0 %v576
    %789 = vmatpush1.msra.mxu0 %v575
    %790 = vmatprep.subr.mxu0 %v580
    %791 = vmatpush1.msra.mxu0 %v579
    %792 = vmatprep.subr.mxu0 %v584
    %793 = vmatpush1.msra.mxu0 %v583
    %794 = vmatprep.subr.mxu0 %v588
    %795 = vmatpush1.msra.mxu0 %v587
    %796 = vmatprep.subr.mxu0 %v592
    %797 = vmatpush1.msra.mxu0 %v591
    %798 = vmatprep.subr.mxu0 %v596
    %799 = vmatpush1.msra.mxu0 %v595
    %800 = vmatprep.subr.mxu0 %v600
    %801 = vmatpush1.msra.mxu0 %v599
    %802 = vmatprep.subr.mxu0 %v604
    %803 = vmatpush1.msra.mxu0 %v603
    %804 = vmatprep.subr.mxu0 %v608
    %805 = vmatpush1.msra.mxu0 %v607
    %806 = vmatprep.subr.mxu0 %v612
    %807 = vmatpush1.msra.mxu0 %v611
    %808 = vmatprep.subr.mxu0 %v616
    %809 = vmatpush1.msra.mxu0 %v615
    %810 = vmatprep.subr.mxu0 %v620
    %811 = vmatpush1.msra.mxu0 %v619
    %812 = vmatprep.subr.mxu0 %v624
    %813 = vmatpush1.msra.mxu0 %v623
    %814 = vmatprep.subr.mxu0 %v628
    %815 = vmatpush1.msra.mxu0 %v627
    %816 = vmatprep.subr.mxu0 %v632
    %817 = vmatpush1.msra.mxu0 %v631
    %818 = vmatprep.subr.mxu0 %v636
    %819 = vmatpush1.msra.mxu0 %v635
    %820 = vmatprep.subr.mxu0 %v640
    %821 = vmatpush1.msra.mxu0 %v639
    %822 = vmatprep.subr.mxu0 %v644
    %823 = vmatpush1.msra.mxu0 %v643
    %824 = vmatprep.subr.mxu0 %v648
    %825 = vmatpush1.msra.mxu0 %v647
    %826 = vmatprep.subr.mxu0 %v652
    %827 = vmatpush1.msra.mxu0 %v651
    %828 = vmatprep.subr.mxu0 %v656
    %829 = vmatpush1.msra.mxu0 %v655
    %830 = vmatprep.subr.mxu0 %v660
    %831 = vmatpush1.msra.mxu0 %v659
    %832 = vmatprep.subr.mxu0 %v664
    %833 = vmatpush1.msra.mxu0 %v663
    %834 = vmatprep.subr.mxu0 %v668
    %835 = vmatpush1.msra.mxu0 %v667
    %836 = vmatprep.subr.mxu0 %v672
    %837 = vmatpush1.msra.mxu0 %v671
    %838 = vmatprep.subr.mxu0 %v676
    %839 = vmatpush1.msra.mxu0 %v675
    %840 = vmatprep.subr.mxu0 %v680
    %841 = vmatpush1.msra.mxu0 %v679
    %842 = vmatprep.subr.mxu0 %v684
    %843 = vmatpush1.msra.mxu0 %v683
    %844 = vmatprep.mubr.f32.mxu0 %v430
    %845 = vmatmul.mubr.f32.gmra.mrb[0].mxu0 %v429
    %v846 = vpop.f32.mrb[0].mxu0
    %v847 = vadd.f32 %v776, %v846
    %v848 = vpop.f32.mrb[0].mxu0
    %v849 = vadd.f32 %v778, %v848
    %850 = vdwg.mxu0
    %851 = vmatprep.subr.mxu0 %v434
    %852 = vmatpush1.msra.mxu0 %v433
    %853 = vmatprep.subr.mxu0 %v438
    %854 = vmatpush1.msra.mxu0 %v437
    %855 = vmatprep.subr.mxu0 %v442
    %856 = vmatpush1.msra.mxu0 %v441
    %857 = vmatprep.subr.mxu0 %v446
    %858 = vmatpush1.msra.mxu0 %v445
    %859 = vmatprep.subr.mxu0 %v450
    %860 = vmatpush1.msra.mxu0 %v449
    %861 = vmatprep.subr.mxu0 %v454
    %862 = vmatpush1.msra.mxu0 %v453
    %863 = vmatprep.subr.mxu0 %v458
    %864 = vmatpush1.msra.mxu0 %v457
    %865 = vmatprep.subr.mxu0 %v462
    %866 = vmatpush1.msra.mxu0 %v461
    %867 = vmatprep.subr.mxu0 %v466
    %868 = vmatpush1.msra.mxu0 %v465
    %869 = vmatprep.subr.mxu0 %v470
    %870 = vmatpush1.msra.mxu0 %v469
    %871 = vmatprep.subr.mxu0 %v474
    %872 = vmatpush1.msra.mxu0 %v473
    %873 = vmatprep.subr.mxu0 %v478
    %874 = vmatpush1.msra.mxu0 %v477
    %875 = vmatprep.subr.mxu0 %v482
    %876 = vmatpush1.msra.mxu0 %v481
    %877 = vmatprep.subr.mxu0 %v486
    %878 = vmatpush1.msra.mxu0 %v485
    %879 = vmatprep.subr.mxu0 %v490
    %880 = vmatpush1.msra.mxu0 %v489
    %881 = vmatprep.subr.mxu0 %v494
    %882 = vmatpush1.msra.mxu0 %v493
    %883 = vmatprep.subr.mxu0 %v498
    %884 = vmatpush1.msra.mxu0 %v497
    %885 = vmatprep.subr.mxu0 %v502
    %886 = vmatpush1.msra.mxu0 %v501
    %887 = vmatprep.subr.mxu0 %v506
    %888 = vmatpush1.msra.mxu0 %v505
    %889 = vmatprep.subr.mxu0 %v510
    %890 = vmatpush1.msra.mxu0 %v509
    %891 = vmatprep.subr.mxu0 %v514
    %892 = vmatpush1.msra.mxu0 %v513
    %893 = vmatprep.subr.mxu0 %v518
    %894 = vmatpush1.msra.mxu0 %v517
    %895 = vmatprep.subr.mxu0 %v522
    %896 = vmatpush1.msra.mxu0 %v521
    %897 = vmatprep.subr.mxu0 %v526
    %898 = vmatpush1.msra.mxu0 %v525
    %899 = vmatprep.subr.mxu0 %v530
    %900 = vmatpush1.msra.mxu0 %v529
    %901 = vmatprep.subr.mxu0 %v534
    %902 = vmatpush1.msra.mxu0 %v533
    %903 = vmatprep.subr.mxu0 %v538
    %904 = vmatpush1.msra.mxu0 %v537
    %905 = vmatprep.subr.mxu0 %v542
    %906 = vmatpush1.msra.mxu0 %v541
    %907 = vmatprep.subr.mxu0 %v546
    %908 = vmatpush1.msra.mxu0 %v545
    %909 = vmatprep.subr.mxu0 %v550
    %910 = vmatpush1.msra.mxu0 %v549
    %911 = vmatprep.subr.mxu0 %v554
    %912 = vmatpush1.msra.mxu0 %v553
    %913 = vmatprep.subr.mxu0 %v558
    %914 = vmatpush1.msra.mxu0 %v557
    %915 = vmatprep.mubr.f32.mxu0 %v428
    %916 = vmatmul.mubr.f32.gmra.mrb[0].mxu0 %v427
    %v917 = vpop.f32.mrb[0].mxu0
    %v918 = vadd.f32 %v700, %v917
    %v919 = vpop.f32.mrb[0].mxu0
    %v920 = vadd.f32 %v704, %v919
    %921 = vdwg.mxu0
    %922 = vmatprep.subr.mxu0 %v562
    %923 = vmatpush1.msra.mxu0 %v561
    %924 = vmatprep.subr.mxu0 %v566
    %925 = vmatpush1.msra.mxu0 %v565
    %926 = vmatprep.subr.mxu0 %v570
    %927 = vmatpush1.msra.mxu0 %v569
    %928 = vmatprep.subr.mxu0 %v574
    %929 = vmatpush1.msra.mxu0 %v573
    %930 = vmatprep.subr.mxu0 %v578
    %931 = vmatpush1.msra.mxu0 %v577
    %932 = vmatprep.subr.mxu0 %v582
    %933 = vmatpush1.msra.mxu0 %v581
    %934 = vmatprep.subr.mxu0 %v586
    %935 = vmatpush1.msra.mxu0 %v585
    %936 = vmatprep.subr.mxu0 %v590
    %937 = vmatpush1.msra.mxu0 %v589
    %938 = vmatprep.subr.mxu0 %v594
    %939 = vmatpush1.msra.mxu0 %v593
    %940 = vmatprep.subr.mxu0 %v598
    %941 = vmatpush1.msra.mxu0 %v597
    %942 = vmatprep.subr.mxu0 %v602
    %943 = vmatpush1.msra.mxu0 %v601
    %944 = vmatprep.subr.mxu0 %v606
    %945 = vmatpush1.msra.mxu0 %v605
    %946 = vmatprep.subr.mxu0 %v610
    %947 = vmatpush1.msra.mxu0 %v609
    %948 = vmatprep.subr.mxu0 %v614
    %949 = vmatpush1.msra.mxu0 %v613
    %950 = vmatprep.subr.mxu0 %v618
    %951 = vmatpush1.msra.mxu0 %v617
    %952 = vmatprep.subr.mxu0 %v622
    %953 = vmatpush1.msra.mxu0 %v621
    %954 = vmatprep.subr.mxu0 %v626
    %955 = vmatpush1.msra.mxu0 %v625
    %956 = vmatprep.subr.mxu0 %v630
    %957 = vmatpush1.msra.mxu0 %v629
    %958 = vmatprep.subr.mxu0 %v634
    %959 = vmatpush1.msra.mxu0 %v633
    %960 = vmatprep.subr.mxu0 %v638
    %961 = vmatpush1.msra.mxu0 %v637
    %962 = vmatprep.subr.mxu0 %v642
    %963 = vmatpush1.msra.mxu0 %v641
    %964 = vmatprep.subr.mxu0 %v646
    %965 = vmatpush1.msra.mxu0 %v645
    %966 = vmatprep.subr.mxu0 %v650
    %967 = vmatpush1.msra.mxu0 %v649
    %968 = vmatprep.subr.mxu0 %v654
    %969 = vmatpush1.msra.mxu0 %v653
    %970 = vmatprep.subr.mxu0 %v658
    %971 = vmatpush1.msra.mxu0 %v657
    %972 = vmatprep.subr.mxu0 %v662
    %973 = vmatpush1.msra.mxu0 %v661
    %974 = vmatprep.subr.mxu0 %v666
    %975 = vmatpush1.msra.mxu0 %v665
    %976 = vmatprep.subr.mxu0 %v670
    %977 = vmatpush1.msra.mxu0 %v669
    %978 = vmatprep.subr.mxu0 %v674
    %979 = vmatpush1.msra.mxu0 %v673
    %980 = vmatprep.subr.mxu0 %v678
    %981 = vmatpush1.msra.mxu0 %v677
    %982 = vmatprep.subr.mxu0 %v682
    %983 = vmatpush1.msra.mxu0 %v681
    %984 = vmatprep.subr.mxu0 %v686
    %985 = vmatpush1.msra.mxu0 %v685
    %986 = vmatprep.mubr.f32.mxu0 %v430
    %987 = vmatmul.mubr.f32.gmra.mrb[0].mxu0 %v429
    %v988 = vpop.f32.mrb[0].mxu0
    %v989 = vadd.f32 %v918, %v988
    %v990 = vpop.f32.mrb[0].mxu0
    %v991 = vadd.f32 %v920, %v990
    %992 = vdwg.mxu0
    %v993 = vmax.f32 %v847, 0.0
    %v994 = vmax.f32 %v849, 0.0
    %v995 = vmax.f32 %v989, 0.0
    %v996 = vmax.f32 %v991, 0.0
    %v997 = vld [vmem:[#allocation9] sm:$0xff]
    %v998 = vld [vmem:[#allocation9 + $0x8] sm:$0xff]
    %v999 = vld [vmem:[#allocation9 + $0x10] sm:$0xff]
    %v1000 = vld [vmem:[#allocation9 + $0x18] sm:$0xff]
    %v1001 = vld [vmem:[#allocation9 + $0x20] sm:$0xff]
    %v1002 = vld [vmem:[#allocation9 + $0x28] sm:$0xff]
    %v1003 = vld [vmem:[#allocation9 + $0x30] sm:$0xff]
    %v1004 = vld [vmem:[#allocation9 + $0x38] sm:$0xff]
    %v1005 = vld [vmem:[#allocation9 + $0x40] sm:$0xff]
    %v1006 = vld [vmem:[#allocation9 + $0x48] sm:$0xff]
    %v1007 = vld [vmem:[#allocation9 + $0x50] sm:$0xff]
    %v1008 = vld [vmem:[#allocation9 + $0x58] sm:$0xff]
    %v1009 = vld [vmem:[#allocation9 + $0x60] sm:$0xff]
    %v1010 = vld [vmem:[#allocation9 + $0x68] sm:$0xff]
    %v1011 = vld [vmem:[#allocation9 + $0x70] sm:$0xff]
    %v1012 = vld [vmem:[#allocation9 + $0x78] sm:$0xff]
    %v1013 = vld [vmem:[#allocation9 + $0x80] sm:$0xff]
    %v1014 = vld [vmem:[#allocation9 + $0x88] sm:$0xff]
    %v1015 = vld [vmem:[#allocation9 + $0x90] sm:$0xff]
    %v1016 = vld [vmem:[#allocation9 + $0x98] sm:$0xff]
    %v1017 = vld [vmem:[#allocation9 + $0xa0] sm:$0xff]
    %v1018 = vld [vmem:[#allocation9 + $0xa8] sm:$0xff]
    %v1019 = vld [vmem:[#allocation9 + $0xb0] sm:$0xff]
    %v1020 = vld [vmem:[#allocation9 + $0xb8] sm:$0xff]
    %v1021 = vld [vmem:[#allocation9 + $0xc0] sm:$0xff]
    %v1022 = vld [vmem:[#allocation9 + $0xc8] sm:$0xff]
    %v1023 = vld [vmem:[#allocation9 + $0xd0] sm:$0xff]
    %v1024 = vld [vmem:[#allocation9 + $0xd8] sm:$0xff]
    %v1025 = vld [vmem:[#allocation9 + $0xe0] sm:$0xff]
    %v1026 = vld [vmem:[#allocation9 + $0xe8] sm:$0xff]
    %v1027 = vld [vmem:[#allocation9 + $0xf0] sm:$0xff]
    %v1028 = vld [vmem:[#allocation9 + $0xf8] sm:$0xff]
    %v1029 = vld [vmem:[#allocation9 + $0x100] sm:$0xff]
    %v1030 = vld [vmem:[#allocation9 + $0x108] sm:$0xff]
    %v1031 = vld [vmem:[#allocation9 + $0x110] sm:$0xff]
    %v1032 = vld [vmem:[#allocation9 + $0x118] sm:$0xff]
    %v1033 = vld [vmem:[#allocation9 + $0x120] sm:$0xff]
    %v1034 = vld [vmem:[#allocation9 + $0x128] sm:$0xff]
    %v1035 = vld [vmem:[#allocation9 + $0x130] sm:$0xff]
    %v1036 = vld [vmem:[#allocation9 + $0x138] sm:$0xff]
    %v1037 = vld [vmem:[#allocation9 + $0x140] sm:$0xff]
    %v1038 = vld [vmem:[#allocation9 + $0x148] sm:$0xff]
    %v1039 = vld [vmem:[#allocation9 + $0x150] sm:$0xff]
    %v1040 = vld [vmem:[#allocation9 + $0x158] sm:$0xff]
    %v1041 = vld [vmem:[#allocation9 + $0x160] sm:$0xff]
    %v1042 = vld [vmem:[#allocation9 + $0x168] sm:$0xff]
    %v1043 = vld [vmem:[#allocation9 + $0x170] sm:$0xff]
    %v1044 = vld [vmem:[#allocation9 + $0x178] sm:$0xff]
    %v1045 = vld [vmem:[#allocation9 + $0x180] sm:$0xff]
    %v1046 = vld [vmem:[#allocation9 + $0x188] sm:$0xff]
    %v1047 = vld [vmem:[#allocation9 + $0x190] sm:$0xff]
    %v1048 = vld [vmem:[#allocation9 + $0x198] sm:$0xff]
    %v1049 = vld [vmem:[#allocation9 + $0x1a0] sm:$0xff]
    %v1050 = vld [vmem:[#allocation9 + $0x1a8] sm:$0xff]
    %v1051 = vld [vmem:[#allocation9 + $0x1b0] sm:$0xff]
    %v1052 = vld [vmem:[#allocation9 + $0x1b8] sm:$0xff]
    %v1053 = vld [vmem:[#allocation9 + $0x1c0] sm:$0xff]
    %v1054 = vld [vmem:[#allocation9 + $0x1c8] sm:$0xff]
    %v1055 = vld [vmem:[#allocation9 + $0x1d0] sm:$0xff]
    %v1056 = vld [vmem:[#allocation9 + $0x1d8] sm:$0xff]
    %v1057 = vld [vmem:[#allocation9 + $0x1e0] sm:$0xff]
    %v1058 = vld [vmem:[#allocation9 + $0x1e8] sm:$0xff]
    %v1059 = vld [vmem:[#allocation9 + $0x1f0] sm:$0xff]
    %v1060 = vld [vmem:[#allocation9 + $0x1f8] sm:$0xff]
    %v1061 = vld [vmem:[#allocation9 + $0x200] sm:$0xff]
    %v1062 = vld [vmem:[#allocation9 + $0x208] sm:$0xff]
    %v1063 = vld [vmem:[#allocation9 + $0x210] sm:$0xff]
    %v1064 = vld [vmem:[#allocation9 + $0x218] sm:$0xff]
    %v1065 = vld [vmem:[#allocation9 + $0x220] sm:$0xff]
    %v1066 = vld [vmem:[#allocation9 + $0x228] sm:$0xff]
    %v1067 = vld [vmem:[#allocation9 + $0x230] sm:$0xff]
    %v1068 = vld [vmem:[#allocation9 + $0x238] sm:$0xff]
    %v1069 = vld [vmem:[#allocation9 + $0x240] sm:$0xff]
    %v1070 = vld [vmem:[#allocation9 + $0x248] sm:$0xff]
    %v1071 = vld [vmem:[#allocation9 + $0x250] sm:$0xff]
    %v1072 = vld [vmem:[#allocation9 + $0x258] sm:$0xff]
    %v1073 = vld [vmem:[#allocation9 + $0x260] sm:$0xff]
    %v1074 = vld [vmem:[#allocation9 + $0x268] sm:$0xff]
    %v1075 = vld [vmem:[#allocation9 + $0x270] sm:$0xff]
    %v1076 = vld [vmem:[#allocation9 + $0x278] sm:$0xff]
    %v1077 = vld [vmem:[#allocation9 + $0x280] sm:$0xff]
    %v1078 = vld [vmem:[#allocation9 + $0x288] sm:$0xff]
    %v1079 = vld [vmem:[#allocation9 + $0x290] sm:$0xff]
    %v1080 = vld [vmem:[#allocation9 + $0x298] sm:$0xff]
    %v1081 = vld [vmem:[#allocation9 + $0x2a0] sm:$0xff]
    %v1082 = vld [vmem:[#allocation9 + $0x2a8] sm:$0xff]
    %v1083 = vld [vmem:[#allocation9 + $0x2b0] sm:$0xff]
    %v1084 = vld [vmem:[#allocation9 + $0x2b8] sm:$0xff]
    %v1085 = vld [vmem:[#allocation9 + $0x2c0] sm:$0xff]
    %v1086 = vld [vmem:[#allocation9 + $0x2c8] sm:$0xff]
    %v1087 = vld [vmem:[#allocation9 + $0x2d0] sm:$0xff]
    %v1088 = vld [vmem:[#allocation9 + $0x2d8] sm:$0xff]
    %v1089 = vld [vmem:[#allocation9 + $0x2e0] sm:$0xff]
    %v1090 = vld [vmem:[#allocation9 + $0x2e8] sm:$0xff]
    %v1091 = vld [vmem:[#allocation9 + $0x2f0] sm:$0xff]
    %v1092 = vld [vmem:[#allocation9 + $0x2f8] sm:$0xff]
    %v1093 = vld [vmem:[#allocation9 + $0x300] sm:$0xff]
    %v1094 = vld [vmem:[#allocation9 + $0x308] sm:$0xff]
    %v1095 = vld [vmem:[#allocation9 + $0x310] sm:$0xff]
    %v1096 = vld [vmem:[#allocation9 + $0x318] sm:$0xff]
    %v1097 = vld [vmem:[#allocation9 + $0x320] sm:$0xff]
    %v1098 = vld [vmem:[#allocation9 + $0x328] sm:$0xff]
    %v1099 = vld [vmem:[#allocation9 + $0x330] sm:$0xff]
    %v1100 = vld [vmem:[#allocation9 + $0x338] sm:$0xff]
    %v1101 = vld [vmem:[#allocation9 + $0x340] sm:$0xff]
    %v1102 = vld [vmem:[#allocation9 + $0x348] sm:$0xff]
    %v1103 = vld [vmem:[#allocation9 + $0x350] sm:$0xff]
    %v1104 = vld [vmem:[#allocation9 + $0x358] sm:$0xff]
    %v1105 = vld [vmem:[#allocation9 + $0x360] sm:$0xff]
    %v1106 = vld [vmem:[#allocation9 + $0x368] sm:$0xff]
    %v1107 = vld [vmem:[#allocation9 + $0x370] sm:$0xff]
    %v1108 = vld [vmem:[#allocation9 + $0x378] sm:$0xff]
    %v1109 = vld [vmem:[#allocation9 + $0x380] sm:$0xff]
    %v1110 = vld [vmem:[#allocation9 + $0x388] sm:$0xff]
    %v1111 = vld [vmem:[#allocation9 + $0x390] sm:$0xff]
    %v1112 = vld [vmem:[#allocation9 + $0x398] sm:$0xff]
    %v1113 = vld [vmem:[#allocation9 + $0x3a0] sm:$0xff]
    %v1114 = vld [vmem:[#allocation9 + $0x3a8] sm:$0xff]
    %v1115 = vld [vmem:[#allocation9 + $0x3b0] sm:$0xff]
    %v1116 = vld [vmem:[#allocation9 + $0x3b8] sm:$0xff]
    %v1117 = vld [vmem:[#allocation9 + $0x3c0] sm:$0xff]
    %v1118 = vld [vmem:[#allocation9 + $0x3c8] sm:$0xff]
    %v1119 = vld [vmem:[#allocation9 + $0x3d0] sm:$0xff]
    %v1120 = vld [vmem:[#allocation9 + $0x3d8] sm:$0xff]
    %v1121 = vld [vmem:[#allocation9 + $0x3e0] sm:$0xff]
    %v1122 = vld [vmem:[#allocation9 + $0x3e8] sm:$0xff]
    %v1123 = vld [vmem:[#allocation9 + $0x3f0] sm:$0xff]
    %v1124 = vld [vmem:[#allocation9 + $0x3f8] sm:$0xff]
    %v1125 = vld [vmem:[#allocation9 + $0x400] sm:$0xff]
    %v1126 = vld [vmem:[#allocation9 + $0x408] sm:$0xff]
    %v1127 = vld [vmem:[#allocation9 + $0x410] sm:$0xff]
    %v1128 = vld [vmem:[#allocation9 + $0x418] sm:$0xff]
    %v1129 = vld [vmem:[#allocation9 + $0x420] sm:$0xff]
    %v1130 = vld [vmem:[#allocation9 + $0x428] sm:$0xff]
    %v1131 = vld [vmem:[#allocation9 + $0x430] sm:$0xff]
    %v1132 = vld [vmem:[#allocation9 + $0x438] sm:$0xff]
    %v1133 = vld [vmem:[#allocation9 + $0x440] sm:$0xff]
    %v1134 = vld [vmem:[#allocation9 + $0x448] sm:$0xff]
    %v1135 = vld [vmem:[#allocation9 + $0x450] sm:$0xff]
    %v1136 = vld [vmem:[#allocation9 + $0x458] sm:$0xff]
    %v1137 = vld [vmem:[#allocation9 + $0x460] sm:$0xff]
    %v1138 = vld [vmem:[#allocation9 + $0x468] sm:$0xff]
    %v1139 = vld [vmem:[#allocation9 + $0x470] sm:$0xff]
    %v1140 = vld [vmem:[#allocation9 + $0x478] sm:$0xff]
    %v1141 = vld [vmem:[#allocation9 + $0x480] sm:$0xff]
    %v1142 = vld [vmem:[#allocation9 + $0x488] sm:$0xff]
    %v1143 = vld [vmem:[#allocation9 + $0x490] sm:$0xff]
    %v1144 = vld [vmem:[#allocation9 + $0x498] sm:$0xff]
    %v1145 = vld [vmem:[#allocation9 + $0x4a0] sm:$0xff]
    %v1146 = vld [vmem:[#allocation9 + $0x4a8] sm:$0xff]
    %v1147 = vld [vmem:[#allocation9 + $0x4b0] sm:$0xff]
    %v1148 = vld [vmem:[#allocation9 + $0x4b8] sm:$0xff]
    %v1149 = vld [vmem:[#allocation9 + $0x4c0] sm:$0xff]
    %v1150 = vld [vmem:[#allocation9 + $0x4c8] sm:$0xff]
    %v1151 = vld [vmem:[#allocation9 + $0x4d0] sm:$0xff]
    %v1152 = vld [vmem:[#allocation9 + $0x4d8] sm:$0xff]
    %v1153 = vld [vmem:[#allocation9 + $0x4e0] sm:$0xff]
    %v1154 = vld [vmem:[#allocation9 + $0x4e8] sm:$0xff]
    %v1155 = vld [vmem:[#allocation9 + $0x4f0] sm:$0xff]
    %v1156 = vld [vmem:[#allocation9 + $0x4f8] sm:$0xff]
    %v1157 = vld [vmem:[#allocation9 + $0x500] sm:$0xff]
    %v1158 = vld [vmem:[#allocation9 + $0x508] sm:$0xff]
    %v1159 = vld [vmem:[#allocation9 + $0x510] sm:$0xff]
    %v1160 = vld [vmem:[#allocation9 + $0x518] sm:$0xff]
    %v1161 = vld [vmem:[#allocation9 + $0x520] sm:$0xff]
    %v1162 = vld [vmem:[#allocation9 + $0x528] sm:$0xff]
    %v1163 = vld [vmem:[#allocation9 + $0x530] sm:$0xff]
    %v1164 = vld [vmem:[#allocation9 + $0x538] sm:$0xff]
    %v1165 = vld [vmem:[#allocation9 + $0x540] sm:$0xff]
    %v1166 = vld [vmem:[#allocation9 + $0x548] sm:$0xff]
    %v1167 = vld [vmem:[#allocation9 + $0x550] sm:$0xff]
    %v1168 = vld [vmem:[#allocation9 + $0x558] sm:$0xff]
    %v1169 = vld [vmem:[#allocation9 + $0x560] sm:$0xff]
    %v1170 = vld [vmem:[#allocation9 + $0x568] sm:$0xff]
    %v1171 = vld [vmem:[#allocation9 + $0x570] sm:$0xff]
    %v1172 = vld [vmem:[#allocation9 + $0x578] sm:$0xff]
    %v1173 = vld [vmem:[#allocation9 + $0x580] sm:$0xff]
    %v1174 = vld [vmem:[#allocation9 + $0x588] sm:$0xff]
    %v1175 = vld [vmem:[#allocation9 + $0x590] sm:$0xff]
    %v1176 = vld [vmem:[#allocation9 + $0x598] sm:$0xff]
    %v1177 = vld [vmem:[#allocation9 + $0x5a0] sm:$0xff]
    %v1178 = vld [vmem:[#allocation9 + $0x5a8] sm:$0xff]
    %v1179 = vld [vmem:[#allocation9 + $0x5b0] sm:$0xff]
    %v1180 = vld [vmem:[#allocation9 + $0x5b8] sm:$0xff]
    %v1181 = vld [vmem:[#allocation9 + $0x5c0] sm:$0xff]
    %v1182 = vld [vmem:[#allocation9 + $0x5c8] sm:$0xff]
    %v1183 = vld [vmem:[#allocation9 + $0x5d0] sm:$0xff]
    %v1184 = vld [vmem:[#allocation9 + $0x5d8] sm:$0xff]
    %v1185 = vld [vmem:[#allocation9 + $0x5e0] sm:$0xff]
    %v1186 = vld [vmem:[#allocation9 + $0x5e8] sm:$0xff]
    %v1187 = vld [vmem:[#allocation9 + $0x5f0] sm:$0xff]
    %v1188 = vld [vmem:[#allocation9 + $0x5f8] sm:$0xff]
    %v1189 = vld [vmem:[#allocation9 + $0x600] sm:$0xff]
    %v1190 = vld [vmem:[#allocation9 + $0x608] sm:$0xff]
    %v1191 = vld [vmem:[#allocation9 + $0x610] sm:$0xff]
    %v1192 = vld [vmem:[#allocation9 + $0x618] sm:$0xff]
    %v1193 = vld [vmem:[#allocation9 + $0x620] sm:$0xff]
    %v1194 = vld [vmem:[#allocation9 + $0x628] sm:$0xff]
    %v1195 = vld [vmem:[#allocation9 + $0x630] sm:$0xff]
    %v1196 = vld [vmem:[#allocation9 + $0x638] sm:$0xff]
    %v1197 = vld [vmem:[#allocation9 + $0x640] sm:$0xff]
    %v1198 = vld [vmem:[#allocation9 + $0x648] sm:$0xff]
    %v1199 = vld [vmem:[#allocation9 + $0x650] sm:$0xff]
    %v1200 = vld [vmem:[#allocation9 + $0x658] sm:$0xff]
    %v1201 = vld [vmem:[#allocation9 + $0x660] sm:$0xff]
    %v1202 = vld [vmem:[#allocation9 + $0x668] sm:$0xff]
    %v1203 = vld [vmem:[#allocation9 + $0x670] sm:$0xff]
    %v1204 = vld [vmem:[#allocation9 + $0x678] sm:$0xff]
    %v1205 = vld [vmem:[#allocation9 + $0x680] sm:$0xff]
    %v1206 = vld [vmem:[#allocation9 + $0x688] sm:$0xff]
    %v1207 = vld [vmem:[#allocation9 + $0x690] sm:$0xff]
    %v1208 = vld [vmem:[#allocation9 + $0x698] sm:$0xff]
    %v1209 = vld [vmem:[#allocation9 + $0x6a0] sm:$0xff]
    %v1210 = vld [vmem:[#allocation9 + $0x6a8] sm:$0xff]
    %v1211 = vld [vmem:[#allocation9 + $0x6b0] sm:$0xff]
    %v1212 = vld [vmem:[#allocation9 + $0x6b8] sm:$0xff]
    %v1213 = vld [vmem:[#allocation9 + $0x6c0] sm:$0xff]
    %v1214 = vld [vmem:[#allocation9 + $0x6c8] sm:$0xff]
    %v1215 = vld [vmem:[#allocation9 + $0x6d0] sm:$0xff]
    %v1216 = vld [vmem:[#allocation9 + $0x6d8] sm:$0xff]
    %v1217 = vld [vmem:[#allocation9 + $0x6e0] sm:$0xff]
    %v1218 = vld [vmem:[#allocation9 + $0x6e8] sm:$0xff]
    %v1219 = vld [vmem:[#allocation9 + $0x6f0] sm:$0xff]
    %v1220 = vld [vmem:[#allocation9 + $0x6f8] sm:$0xff]
    %v1221 = vld [vmem:[#allocation9 + $0x700] sm:$0xff]
    %v1222 = vld [vmem:[#allocation9 + $0x708] sm:$0xff]
    %v1223 = vld [vmem:[#allocation9 + $0x710] sm:$0xff]
    %v1224 = vld [vmem:[#allocation9 + $0x718] sm:$0xff]
    %v1225 = vld [vmem:[#allocation9 + $0x720] sm:$0xff]
    %v1226 = vld [vmem:[#allocation9 + $0x728] sm:$0xff]
    %v1227 = vld [vmem:[#allocation9 + $0x730] sm:$0xff]
    %v1228 = vld [vmem:[#allocation9 + $0x738] sm:$0xff]
    %v1229 = vld [vmem:[#allocation9 + $0x740] sm:$0xff]
    %v1230 = vld [vmem:[#allocation9 + $0x748] sm:$0xff]
    %v1231 = vld [vmem:[#allocation9 + $0x750] sm:$0xff]
    %v1232 = vld [vmem:[#allocation9 + $0x758] sm:$0xff]
    %v1233 = vld [vmem:[#allocation9 + $0x760] sm:$0xff]
    %v1234 = vld [vmem:[#allocation9 + $0x768] sm:$0xff]
    %v1235 = vld [vmem:[#allocation9 + $0x770] sm:$0xff]
    %v1236 = vld [vmem:[#allocation9 + $0x778] sm:$0xff]
    %v1237 = vld [vmem:[#allocation9 + $0x780] sm:$0xff]
    %v1238 = vld [vmem:[#allocation9 + $0x788] sm:$0xff]
    %v1239 = vld [vmem:[#allocation9 + $0x790] sm:$0xff]
    %v1240 = vld [vmem:[#allocation9 + $0x798] sm:$0xff]
    %v1241 = vld [vmem:[#allocation9 + $0x7a0] sm:$0xff]
    %v1242 = vld [vmem:[#allocation9 + $0x7a8] sm:$0xff]
    %v1243 = vld [vmem:[#allocation9 + $0x7b0] sm:$0xff]
    %v1244 = vld [vmem:[#allocation9 + $0x7b8] sm:$0xff]
    %v1245 = vld [vmem:[#allocation9 + $0x7c0] sm:$0xff]
    %v1246 = vld [vmem:[#allocation9 + $0x7c8] sm:$0xff]
    %v1247 = vld [vmem:[#allocation9 + $0x7d0] sm:$0xff]
    %v1248 = vld [vmem:[#allocation9 + $0x7d8] sm:$0xff]
    %v1249 = vld [vmem:[#allocation9 + $0x7e0] sm:$0xff]
    %v1250 = vld [vmem:[#allocation9 + $0x7e8] sm:$0xff]
    %v1251 = vld [vmem:[#allocation9 + $0x7f0] sm:$0xff]
    %v1252 = vld [vmem:[#allocation9 + $0x7f8] sm:$0xff]
    %v1253 = vld [vmem:[#allocation9 + $0x800] sm:$0xff]
    %v1254 = vld [vmem:[#allocation9 + $0x808] sm:$0xff]
    %v1255 = vld [vmem:[#allocation9 + $0x810] sm:$0xff]
    %v1256 = vld [vmem:[#allocation9 + $0x818] sm:$0xff]
    %v1257 = vld [vmem:[#allocation9 + $0x820] sm:$0xff]
    %v1258 = vld [vmem:[#allocation9 + $0x828] sm:$0xff]
    %v1259 = vld [vmem:[#allocation9 + $0x830] sm:$0xff]
    %v1260 = vld [vmem:[#allocation9 + $0x838] sm:$0xff]
    %v1261 = vld [vmem:[#allocation9 + $0x840] sm:$0xff]
    %v1262 = vld [vmem:[#allocation9 + $0x848] sm:$0xff]
    %v1263 = vld [vmem:[#allocation9 + $0x850] sm:$0xff]
    %v1264 = vld [vmem:[#allocation9 + $0x858] sm:$0xff]
    %v1265 = vld [vmem:[#allocation9 + $0x860] sm:$0xff]
    %v1266 = vld [vmem:[#allocation9 + $0x868] sm:$0xff]
    %v1267 = vld [vmem:[#allocation9 + $0x870] sm:$0xff]
    %v1268 = vld [vmem:[#allocation9 + $0x878] sm:$0xff]
    %v1269 = vld [vmem:[#allocation9 + $0x880] sm:$0xff]
    %v1270 = vld [vmem:[#allocation9 + $0x888] sm:$0xff]
    %v1271 = vld [vmem:[#allocation9 + $0x890] sm:$0xff]
    %v1272 = vld [vmem:[#allocation9 + $0x898] sm:$0xff]
    %v1273 = vld [vmem:[#allocation9 + $0x8a0] sm:$0xff]
    %v1274 = vld [vmem:[#allocation9 + $0x8a8] sm:$0xff]
    %v1275 = vld [vmem:[#allocation9 + $0x8b0] sm:$0xff]
    %v1276 = vld [vmem:[#allocation9 + $0x8b8] sm:$0xff]
    %v1277 = vld [vmem:[#allocation9 + $0x8c0] sm:$0xff]
    %v1278 = vld [vmem:[#allocation9 + $0x8c8] sm:$0xff]
    %v1279 = vld [vmem:[#allocation9 + $0x8d0] sm:$0xff]
    %v1280 = vld [vmem:[#allocation9 + $0x8d8] sm:$0xff]
    %v1281 = vld [vmem:[#allocation9 + $0x8e0] sm:$0xff]
    %v1282 = vld [vmem:[#allocation9 + $0x8e8] sm:$0xff]
    %v1283 = vld [vmem:[#allocation9 + $0x8f0] sm:$0xff]
    %v1284 = vld [vmem:[#allocation9 + $0x8f8] sm:$0xff]
    %v1285 = vld [vmem:[#allocation9 + $0x900] sm:$0xff]
    %v1286 = vld [vmem:[#allocation9 + $0x908] sm:$0xff]
    %v1287 = vld [vmem:[#allocation9 + $0x910] sm:$0xff]
    %v1288 = vld [vmem:[#allocation9 + $0x918] sm:$0xff]
    %v1289 = vld [vmem:[#allocation9 + $0x920] sm:$0xff]
    %v1290 = vld [vmem:[#allocation9 + $0x928] sm:$0xff]
    %v1291 = vld [vmem:[#allocation9 + $0x930] sm:$0xff]
    %v1292 = vld [vmem:[#allocation9 + $0x938] sm:$0xff]
    %v1293 = vld [vmem:[#allocation9 + $0x940] sm:$0xff]
    %v1294 = vld [vmem:[#allocation9 + $0x948] sm:$0xff]
    %v1295 = vld [vmem:[#allocation9 + $0x950] sm:$0xff]
    %v1296 = vld [vmem:[#allocation9 + $0x958] sm:$0xff]
    %v1297 = vld [vmem:[#allocation9 + $0x960] sm:$0xff]
    %v1298 = vld [vmem:[#allocation9 + $0x968] sm:$0xff]
    %v1299 = vld [vmem:[#allocation9 + $0x970] sm:$0xff]
    %v1300 = vld [vmem:[#allocation9 + $0x978] sm:$0xff]
    %v1301 = vld [vmem:[#allocation9 + $0x980] sm:$0xff]
    %v1302 = vld [vmem:[#allocation9 + $0x988] sm:$0xff]
    %v1303 = vld [vmem:[#allocation9 + $0x990] sm:$0xff]
    %v1304 = vld [vmem:[#allocation9 + $0x998] sm:$0xff]
    %v1305 = vld [vmem:[#allocation9 + $0x9a0] sm:$0xff]
    %v1306 = vld [vmem:[#allocation9 + $0x9a8] sm:$0xff]
    %v1307 = vld [vmem:[#allocation9 + $0x9b0] sm:$0xff]
    %v1308 = vld [vmem:[#allocation9 + $0x9b8] sm:$0xff]
    %v1309 = vld [vmem:[#allocation9 + $0x9c0] sm:$0xff]
    %v1310 = vld [vmem:[#allocation9 + $0x9c8] sm:$0xff]
    %v1311 = vld [vmem:[#allocation9 + $0x9d0] sm:$0xff]
    %v1312 = vld [vmem:[#allocation9 + $0x9d8] sm:$0xff]
    %v1313 = vld [vmem:[#allocation9 + $0x9e0] sm:$0xff]
    %v1314 = vld [vmem:[#allocation9 + $0x9e8] sm:$0xff]
    %v1315 = vld [vmem:[#allocation9 + $0x9f0] sm:$0xff]
    %v1316 = vld [vmem:[#allocation9 + $0x9f8] sm:$0xff]
    %v1317 = vld [vmem:[#allocation10] sm:$0x1f]
    %v1319 = vlaneseq
    %v1320 = vshrl.u32 %v1319, 7
    %v1321 = vsub.s32 0, %v1320
    %v1322 = vrot.slane %v1317, %v1321
    %v1323 = vlaneseq
    %v1324 = vshrl.u32 %v1323, 7
    %v1325 = vsub.s32 1, %v1324
    %v1326 = vrot.slane %v1317, %v1325
    %v1327 = vlaneseq
    %v1328 = vshrl.u32 %v1327, 7
    %v1329 = vsub.s32 2, %v1328
    %v1330 = vrot.slane %v1317, %v1329
    %v1331 = vlaneseq
    %v1332 = vshrl.u32 %v1331, 7
    %v1333 = vsub.s32 3, %v1332
    %v1334 = vrot.slane %v1317, %v1333
    %v1335 = vlaneseq
    %v1336 = vshrl.u32 %v1335, 7
    %v1337 = vsub.s32 4, %v1336
    %v1338 = vrot.slane %v1317, %v1337
    %1344 = vmatprep.subr.mxu0 %v998
    %1345 = vmatpush1.msra.mxu0 %v997
    %1346 = vmatprep.subr.mxu0 %v1003
    %1347 = vmatpush1.msra.mxu0 %v1002
    %1348 = vmatprep.subr.mxu0 %v1008
    %1349 = vmatpush1.msra.mxu0 %v1007
    %1350 = vmatprep.subr.mxu0 %v1013
    %1351 = vmatpush1.msra.mxu0 %v1012
    %1352 = vmatprep.subr.mxu0 %v1018
    %1353 = vmatpush1.msra.mxu0 %v1017
    %1354 = vmatprep.subr.mxu0 %v1023
    %1355 = vmatpush1.msra.mxu0 %v1022
    %1356 = vmatprep.subr.mxu0 %v1028
    %1357 = vmatpush1.msra.mxu0 %v1027
    %1358 = vmatprep.subr.mxu0 %v1033
    %1359 = vmatpush1.msra.mxu0 %v1032
    %1360 = vmatprep.subr.mxu0 %v1038
    %1361 = vmatpush1.msra.mxu0 %v1037
    %1362 = vmatprep.subr.mxu0 %v1043
    %1363 = vmatpush1.msra.mxu0 %v1042
    %1364 = vmatprep.subr.mxu0 %v1048
    %1365 = vmatpush1.msra.mxu0 %v1047
    %1366 = vmatprep.subr.mxu0 %v1053
    %1367 = vmatpush1.msra.mxu0 %v1052
    %1368 = vmatprep.subr.mxu0 %v1058
    %1369 = vmatpush1.msra.mxu0 %v1057
    %1370 = vmatprep.subr.mxu0 %v1063
    %1371 = vmatpush1.msra.mxu0 %v1062
    %1372 = vmatprep.subr.mxu0 %v1068
    %1373 = vmatpush1.msra.mxu0 %v1067
    %1374 = vmatprep.subr.mxu0 %v1073
    %1375 = vmatpush1.msra.mxu0 %v1072
    %1376 = vmatprep.subr.mxu0 %v1078
    %1377 = vmatpush1.msra.mxu0 %v1077
    %1378 = vmatprep.subr.mxu0 %v1083
    %1379 = vmatpush1.msra.mxu0 %v1082
    %1380 = vmatprep.subr.mxu0 %v1088
    %1381 = vmatpush1.msra.mxu0 %v1087
    %1382 = vmatprep.subr.mxu0 %v1093
    %1383 = vmatpush1.msra.mxu0 %v1092
    %1384 = vmatprep.subr.mxu0 %v1098
    %1385 = vmatpush1.msra.mxu0 %v1097
    %1386 = vmatprep.subr.mxu0 %v1103
    %1387 = vmatpush1.msra.mxu0 %v1102
    %1388 = vmatprep.subr.mxu0 %v1108
    %1389 = vmatpush1.msra.mxu0 %v1107
    %1390 = vmatprep.subr.mxu0 %v1113
    %1391 = vmatpush1.msra.mxu0 %v1112
    %1392 = vmatprep.subr.mxu0 %v1118
    %1393 = vmatpush1.msra.mxu0 %v1117
    %1394 = vmatprep.subr.mxu0 %v1123
    %1395 = vmatpush1.msra.mxu0 %v1122
    %1396 = vmatprep.subr.mxu0 %v1128
    %1397 = vmatpush1.msra.mxu0 %v1127
    %1398 = vmatprep.subr.mxu0 %v1133
    %1399 = vmatpush1.msra.mxu0 %v1132
    %1400 = vmatprep.subr.mxu0 %v1138
    %1401 = vmatpush1.msra.mxu0 %v1137
    %1402 = vmatprep.subr.mxu0 %v1143
    %1403 = vmatpush1.msra.mxu0 %v1142
    %1404 = vmatprep.subr.mxu0 %v1148
    %1405 = vmatpush1.msra.mxu0 %v1147
    %1406 = vmatprep.subr.mxu0 %v1153
    %1407 = vmatpush1.msra.mxu0 %v1152
    %1408 = vmatprep.mubr.f32.mxu0 %v994
    %1409 = vmatmul.mubr.f32.gmra.mrb[0].mxu0 %v993
    %v1410 = vpop.f32.mrb[0].mxu0
    %v1411 = vadd.f32 %v1322, %v1410
    %v1412 = vpop.f32.mrb[0].mxu0
    %v1413 = vadd.f32 %v1326, %v1412
    %1414 = vdwg.mxu0
    %1415 = vmatprep.subr.mxu0 %v1158
    %1416 = vmatpush1.msra.mxu0 %v1157
    %1417 = vmatprep.subr.mxu0 %v1163
    %1418 = vmatpush1.msra.mxu0 %v1162
    %1419 = vmatprep.subr.mxu0 %v1168
    %1420 = vmatpush1.msra.mxu0 %v1167
    %1421 = vmatprep.subr.mxu0 %v1173
    %1422 = vmatpush1.msra.mxu0 %v1172
    %1423 = vmatprep.subr.mxu0 %v1178
    %1424 = vmatpush1.msra.mxu0 %v1177
    %1425 = vmatprep.subr.mxu0 %v1183
    %1426 = vmatpush1.msra.mxu0 %v1182
    %1427 = vmatprep.subr.mxu0 %v1188
    %1428 = vmatpush1.msra.mxu0 %v1187
    %1429 = vmatprep.subr.mxu0 %v1193
    %1430 = vmatpush1.msra.mxu0 %v1192
    %1431 = vmatprep.subr.mxu0 %v1198
    %1432 = vmatpush1.msra.mxu0 %v1197
    %1433 = vmatprep.subr.mxu0 %v1203
    %1434 = vmatpush1.msra.mxu0 %v1202
    %1435 = vmatprep.subr.mxu0 %v1208
    %1436 = vmatpush1.msra.mxu0 %v1207
    %1437 = vmatprep.subr.mxu0 %v1213
    %1438 = vmatpush1.msra.mxu0 %v1212
    %1439 = vmatprep.subr.mxu0 %v1218
    %1440 = vmatpush1.msra.mxu0 %v1217
    %1441 = vmatprep.subr.mxu0 %v1223
    %1442 = vmatpush1.msra.mxu0 %v1222
    %1443 = vmatprep.subr.mxu0 %v1228
    %1444 = vmatpush1.msra.mxu0 %v1227
    %1445 = vmatprep.subr.mxu0 %v1233
    %1446 = vmatpush1.msra.mxu0 %v1232
    %1447 = vmatprep.subr.mxu0 %v1238
    %1448 = vmatpush1.msra.mxu0 %v1237
    %1449 = vmatprep.subr.mxu0 %v1243
    %1450 = vmatpush1.msra.mxu0 %v1242
    %1451 = vmatprep.subr.mxu0 %v1248
    %1452 = vmatpush1.msra.mxu0 %v1247
    %1453 = vmatprep.subr.mxu0 %v1253
    %1454 = vmatpush1.msra.mxu0 %v1252
    %1455 = vmatprep.subr.mxu0 %v1258
    %1456 = vmatpush1.msra.mxu0 %v1257
    %1457 = vmatprep.subr.mxu0 %v1263
    %1458 = vmatpush1.msra.mxu0 %v1262
    %1459 = vmatprep.subr.mxu0 %v1268
    %1460 = vmatpush1.msra.mxu0 %v1267
    %1461 = vmatprep.subr.mxu0 %v1273
    %1462 = vmatpush1.msra.mxu0 %v1272
    %1463 = vmatprep.subr.mxu0 %v1278
    %1464 = vmatpush1.msra.mxu0 %v1277
    %1465 = vmatprep.subr.mxu0 %v1283
    %1466 = vmatpush1.msra.mxu0 %v1282
    %1467 = vmatprep.subr.mxu0 %v1288
    %1468 = vmatpush1.msra.mxu0 %v1287
    %1469 = vmatprep.subr.mxu0 %v1293
    %1470 = vmatpush1.msra.mxu0 %v1292
    %1471 = vmatprep.subr.mxu0 %v1298
    %1472 = vmatpush1.msra.mxu0 %v1297
    %1473 = vmatprep.subr.mxu0 %v1303
    %1474 = vmatpush1.msra.mxu0 %v1302
    %1475 = vmatprep.subr.mxu0 %v1308
    %1476 = vmatpush1.msra.mxu0 %v1307
    %1477 = vmatprep.subr.mxu0 %v1313
    %1478 = vmatpush1.msra.mxu0 %v1312
    %1479 = vmatprep.mubr.f32.mxu0 %v996
    %1480 = vmatmul.mubr.f32.gmra.mrb[0].mxu0 %v995
    %v1481 = vpop.f32.mrb[0].mxu0
    %v1482 = vadd.f32 %v1411, %v1481
    %v1483 = vpop.f32.mrb[0].mxu0
    %v1484 = vadd.f32 %v1413, %v1483
    %1485 = vdwg.mxu0
    %1486 = vmatprep.subr.mxu0 %v1000
    %1487 = vmatpush1.msra.mxu0 %v999
    %1488 = vmatprep.subr.mxu0 %v1005
    %1489 = vmatpush1.msra.mxu0 %v1004
    %1490 = vmatprep.subr.mxu0 %v1010
    %1491 = vmatpush1.msra.mxu0 %v1009
    %1492 = vmatprep.subr.mxu0 %v1015
    %1493 = vmatpush1.msra.mxu0 %v1014
    %1494 = vmatprep.subr.mxu0 %v1020
    %1495 = vmatpush1.msra.mxu0 %v1019
    %1496 = vmatprep.subr.mxu0 %v1025
    %1497 = vmatpush1.msra.mxu0 %v1024
    %1498 = vmatprep.subr.mxu0 %v1030
    %1499 = vmatpush1.msra.mxu0 %v1029
    %1500 = vmatprep.subr.mxu0 %v1035
    %1501 = vmatpush1.msra.mxu0 %v1034
    %1502 = vmatprep.subr.mxu0 %v1040
    %1503 = vmatpush1.msra.mxu0 %v1039
    %1504 = vmatprep.subr.mxu0 %v1045
    %1505 = vmatpush1.msra.mxu0 %v1044
    %1506 = vmatprep.subr.mxu0 %v1050
    %1507 = vmatpush1.msra.mxu0 %v1049
    %1508 = vmatprep.subr.mxu0 %v1055
    %1509 = vmatpush1.msra.mxu0 %v1054
    %1510 = vmatprep.subr.mxu0 %v1060
    %1511 = vmatpush1.msra.mxu0 %v1059
    %1512 = vmatprep.subr.mxu0 %v1065
    %1513 = vmatpush1.msra.mxu0 %v1064
    %1514 = vmatprep.subr.mxu0 %v1070
    %1515 = vmatpush1.msra.mxu0 %v1069
    %1516 = vmatprep.subr.mxu0 %v1075
    %1517 = vmatpush1.msra.mxu0 %v1074
    %1518 = vmatprep.subr.mxu0 %v1080
    %1519 = vmatpush1.msra.mxu0 %v1079
    %1520 = vmatprep.subr.mxu0 %v1085
    %1521 = vmatpush1.msra.mxu0 %v1084
    %1522 = vmatprep.subr.mxu0 %v1090
    %1523 = vmatpush1.msra.mxu0 %v1089
    %1524 = vmatprep.subr.mxu0 %v1095
    %1525 = vmatpush1.msra.mxu0 %v1094
    %1526 = vmatprep.subr.mxu0 %v1100
    %1527 = vmatpush1.msra.mxu0 %v1099
    %1528 = vmatprep.subr.mxu0 %v1105
    %1529 = vmatpush1.msra.mxu0 %v1104
    %1530 = vmatprep.subr.mxu0 %v1110
    %1531 = vmatpush1.msra.mxu0 %v1109
    %1532 = vmatprep.subr.mxu0 %v1115
    %1533 = vmatpush1.msra.mxu0 %v1114
    %1534 = vmatprep.subr.mxu0 %v1120
    %1535 = vmatpush1.msra.mxu0 %v1119
    %1536 = vmatprep.subr.mxu0 %v1125
    %1537 = vmatpush1.msra.mxu0 %v1124
    %1538 = vmatprep.subr.mxu0 %v1130
    %1539 = vmatpush1.msra.mxu0 %v1129
    %1540 = vmatprep.subr.mxu0 %v1135
    %1541 = vmatpush1.msra.mxu0 %v1134
    %1542 = vmatprep.subr.mxu0 %v1140
    %1543 = vmatpush1.msra.mxu0 %v1139
    %1544 = vmatprep.subr.mxu0 %v1145
    %1545 = vmatpush1.msra.mxu0 %v1144
    %1546 = vmatprep.subr.mxu0 %v1150
    %1547 = vmatpush1.msra.mxu0 %v1149
    %1548 = vmatprep.subr.mxu0 %v1155
    %1549 = vmatpush1.msra.mxu0 %v1154
    %1550 = vmatprep.mubr.f32.mxu0 %v994
    %1551 = vmatmul.mubr.f32.gmra.mrb[0].mxu0 %v993
    %v1552 = vpop.f32.mrb[0].mxu0
    %v1553 = vadd.f32 %v1330, %v1552
    %v1554 = vpop.f32.mrb[0].mxu0
    %v1555 = vadd.f32 %v1334, %v1554
    %1556 = vdwg.mxu0
    %1557 = vmatprep.subr.mxu0 %v1160
    %1558 = vmatpush1.msra.mxu0 %v1159
    %1559 = vmatprep.subr.mxu0 %v1165
    %1560 = vmatpush1.msra.mxu0 %v1164
    %1561 = vmatprep.subr.mxu0 %v1170
    %1562 = vmatpush1.msra.mxu0 %v1169
    %1563 = vmatprep.subr.mxu0 %v1175
    %1564 = vmatpush1.msra.mxu0 %v1174
    %1565 = vmatprep.subr.mxu0 %v1180
    %1566 = vmatpush1.msra.mxu0 %v1179
    %1567 = vmatprep.subr.mxu0 %v1185
    %1568 = vmatpush1.msra.mxu0 %v1184
    %1569 = vmatprep.subr.mxu0 %v1190
    %1570 = vmatpush1.msra.mxu0 %v1189
    %1571 = vmatprep.subr.mxu0 %v1195
    %1572 = vmatpush1.msra.mxu0 %v1194
    %1573 = vmatprep.subr.mxu0 %v1200
    %1574 = vmatpush1.msra.mxu0 %v1199
    %1575 = vmatprep.subr.mxu0 %v1205
    %1576 = vmatpush1.msra.mxu0 %v1204
    %1577 = vmatprep.subr.mxu0 %v1210
    %1578 = vmatpush1.msra.mxu0 %v1209
    %1579 = vmatprep.subr.mxu0 %v1215
    %1580 = vmatpush1.msra.mxu0 %v1214
    %1581 = vmatprep.subr.mxu0 %v1220
    %1582 = vmatpush1.msra.mxu0 %v1219
    %1583 = vmatprep.subr.mxu0 %v1225
    %1584 = vmatpush1.msra.mxu0 %v1224
    %1585 = vmatprep.subr.mxu0 %v1230
    %1586 = vmatpush1.msra.mxu0 %v1229
    %1587 = vmatprep.subr.mxu0 %v1235
    %1588 = vmatpush1.msra.mxu0 %v1234
    %1589 = vmatprep.subr.mxu0 %v1240
    %1590 = vmatpush1.msra.mxu0 %v1239
    %1591 = vmatprep.subr.mxu0 %v1245
    %1592 = vmatpush1.msra.mxu0 %v1244
    %1593 = vmatprep.subr.mxu0 %v1250
    %1594 = vmatpush1.msra.mxu0 %v1249
    %1595 = vmatprep.subr.mxu0 %v1255
    %1596 = vmatpush1.msra.mxu0 %v1254
    %1597 = vmatprep.subr.mxu0 %v1260
    %1598 = vmatpush1.msra.mxu0 %v1259
    %1599 = vmatprep.subr.mxu0 %v1265
    %1600 = vmatpush1.msra.mxu0 %v1264
    %1601 = vmatprep.subr.mxu0 %v1270
    %1602 = vmatpush1.msra.mxu0 %v1269
    %1603 = vmatprep.subr.mxu0 %v1275
    %1604 = vmatpush1.msra.mxu0 %v1274
    %1605 = vmatprep.subr.mxu0 %v1280
    %1606 = vmatpush1.msra.mxu0 %v1279
    %1607 = vmatprep.subr.mxu0 %v1285
    %1608 = vmatpush1.msra.mxu0 %v1284
    %1609 = vmatprep.subr.mxu0 %v1290
    %1610 = vmatpush1.msra.mxu0 %v1289
    %1611 = vmatprep.subr.mxu0 %v1295
    %1612 = vmatpush1.msra.mxu0 %v1294
    %1613 = vmatprep.subr.mxu0 %v1300
    %1614 = vmatpush1.msra.mxu0 %v1299
    %1615 = vmatprep.subr.mxu0 %v1305
    %1616 = vmatpush1.msra.mxu0 %v1304
    %1617 = vmatprep.subr.mxu0 %v1310
    %1618 = vmatpush1.msra.mxu0 %v1309
    %1619 = vmatprep.subr.mxu0 %v1315
    %1620 = vmatpush1.msra.mxu0 %v1314
    %1621 = vmatprep.mubr.f32.mxu0 %v996
    %1622 = vmatmul.mubr.f32.gmra.mrb[0].mxu0 %v995
    %v1623 = vpop.f32.mrb[0].mxu0
    %v1624 = vadd.f32 %v1553, %v1623
    %v1625 = vpop.f32.mrb[0].mxu0
    %v1626 = vadd.f32 %v1555, %v1625
    %1627 = vdwg.mxu0
    %1628 = vmatprep.subr.mxu0 0.0
    %1629 = vmatpush1.msra.mxu0 %v1001
    %1630 = vmatprep.subr.mxu0 0.0
    %1631 = vmatpush1.msra.mxu0 %v1006
    %1632 = vmatprep.subr.mxu0 0.0
    %1633 = vmatpush1.msra.mxu0 %v1011
    %1634 = vmatprep.subr.mxu0 0.0
    %1635 = vmatpush1.msra.mxu0 %v1016
    %1636 = vmatprep.subr.mxu0 0.0
    %1637 = vmatpush1.msra.mxu0 %v1021
    %1638 = vmatprep.subr.mxu0 0.0
    %1639 = vmatpush1.msra.mxu0 %v1026
    %1640 = vmatprep.subr.mxu0 0.0
    %1641 = vmatpush1.msra.mxu0 %v1031
    %1642 = vmatprep.subr.mxu0 0.0
    %1643 = vmatpush1.msra.mxu0 %v1036
    %1644 = vmatprep.subr.mxu0 0.0
    %1645 = vmatpush1.msra.mxu0 %v1041
    %1646 = vmatprep.subr.mxu0 0.0
    %1647 = vmatpush1.msra.mxu0 %v1046
    %1648 = vmatprep.subr.mxu0 0.0
    %1649 = vmatpush1.msra.mxu0 %v1051
    %1650 = vmatprep.subr.mxu0 0.0
    %1651 = vmatpush1.msra.mxu0 %v1056
    %1652 = vmatprep.subr.mxu0 0.0
    %1653 = vmatpush1.msra.mxu0 %v1061
    %1654 = vmatprep.subr.mxu0 0.0
    %1655 = vmatpush1.msra.mxu0 %v1066
    %1656 = vmatprep.subr.mxu0 0.0
    %1657 = vmatpush1.msra.mxu0 %v1071
    %1658 = vmatprep.subr.mxu0 0.0
    %1659 = vmatpush1.msra.mxu0 %v1076
    %1660 = vmatprep.subr.mxu0 0.0
    %1661 = vmatpush1.msra.mxu0 %v1081
    %1662 = vmatprep.subr.mxu0 0.0
    %1663 = vmatpush1.msra.mxu0 %v1086
    %1664 = vmatprep.subr.mxu0 0.0
    %1665 = vmatpush1.msra.mxu0 %v1091
    %1666 = vmatprep.subr.mxu0 0.0
    %1667 = vmatpush1.msra.mxu0 %v1096
    %1668 = vmatprep.subr.mxu0 0.0
    %1669 = vmatpush1.msra.mxu0 %v1101
    %1670 = vmatprep.subr.mxu0 0.0
    %1671 = vmatpush1.msra.mxu0 %v1106
    %1672 = vmatprep.subr.mxu0 0.0
    %1673 = vmatpush1.msra.mxu0 %v1111
    %1674 = vmatprep.subr.mxu0 0.0
    %1675 = vmatpush1.msra.mxu0 %v1116
    %1676 = vmatprep.subr.mxu0 0.0
    %1677 = vmatpush1.msra.mxu0 %v1121
    %1678 = vmatprep.subr.mxu0 0.0
    %1679 = vmatpush1.msra.mxu0 %v1126
    %1680 = vmatprep.subr.mxu0 0.0
    %1681 = vmatpush1.msra.mxu0 %v1131
    %1682 = vmatprep.subr.mxu0 0.0
    %1683 = vmatpush1.msra.mxu0 %v1136
    %1684 = vmatprep.subr.mxu0 0.0
    %1685 = vmatpush1.msra.mxu0 %v1141
    %1686 = vmatprep.subr.mxu0 0.0
    %1687 = vmatpush1.msra.mxu0 %v1146
    %1688 = vmatprep.subr.mxu0 0.0
    %1689 = vmatpush1.msra.mxu0 %v1151
    %1690 = vmatprep.subr.mxu0 0.0
    %1691 = vmatpush1.msra.mxu0 %v1156
    %1692 = vmatprep.mubr.f32.mxu0 %v994
    %1693 = vmatmul.mubr.f32.gmra.mrb[0].mxu0 %v993
    %v1694 = vpop.f32.mrb[0].mxu0
    %v1695 = vadd.f32 %v1338, %v1694
    %v1696 = vpop.f32.mrb[0].mxu0
    %1697 = vdwg.mxu0
    %1698 = vmatprep.subr.mxu0 0.0
    %1699 = vmatpush1.msra.mxu0 %v1161
    %1700 = vmatprep.subr.mxu0 0.0
    %1701 = vmatpush1.msra.mxu0 %v1166
    %1702 = vmatprep.subr.mxu0 0.0
    %1703 = vmatpush1.msra.mxu0 %v1171
    %1704 = vmatprep.subr.mxu0 0.0
    %1705 = vmatpush1.msra.mxu0 %v1176
    %1706 = vmatprep.subr.mxu0 0.0
    %1707 = vmatpush1.msra.mxu0 %v1181
    %1708 = vmatprep.subr.mxu0 0.0
    %1709 = vmatpush1.msra.mxu0 %v1186
    %1710 = vmatprep.subr.mxu0 0.0
    %1711 = vmatpush1.msra.mxu0 %v1191
    %1712 = vmatprep.subr.mxu0 0.0
    %1713 = vmatpush1.msra.mxu0 %v1196
    %1714 = vmatprep.subr.mxu0 0.0
    %1715 = vmatpush1.msra.mxu0 %v1201
    %1716 = vmatprep.subr.mxu0 0.0
    %1717 = vmatpush1.msra.mxu0 %v1206
    %1718 = vmatprep.subr.mxu0 0.0
    %1719 = vmatpush1.msra.mxu0 %v1211
    %1720 = vmatprep.subr.mxu0 0.0
    %1721 = vmatpush1.msra.mxu0 %v1216
    %1722 = vmatprep.subr.mxu0 0.0
    %1723 = vmatpush1.msra.mxu0 %v1221
    %1724 = vmatprep.subr.mxu0 0.0
    %1725 = vmatpush1.msra.mxu0 %v1226
    %1726 = vmatprep.subr.mxu0 0.0
    %1727 = vmatpush1.msra.mxu0 %v1231
    %1728 = vmatprep.subr.mxu0 0.0
    %1729 = vmatpush1.msra.mxu0 %v1236
    %1730 = vmatprep.subr.mxu0 0.0
    %1731 = vmatpush1.msra.mxu0 %v1241
    %1732 = vmatprep.subr.mxu0 0.0
    %1733 = vmatpush1.msra.mxu0 %v1246
    %1734 = vmatprep.subr.mxu0 0.0
    %1735 = vmatpush1.msra.mxu0 %v1251
    %1736 = vmatprep.subr.mxu0 0.0
    %1737 = vmatpush1.msra.mxu0 %v1256
    %1738 = vmatprep.subr.mxu0 0.0
    %1739 = vmatpush1.msra.mxu0 %v1261
    %1740 = vmatprep.subr.mxu0 0.0
    %1741 = vmatpush1.msra.mxu0 %v1266
    %1742 = vmatprep.subr.mxu0 0.0
    %1743 = vmatpush1.msra.mxu0 %v1271
    %1744 = vmatprep.subr.mxu0 0.0
    %1745 = vmatpush1.msra.mxu0 %v1276
    %1746 = vmatprep.subr.mxu0 0.0
    %1747 = vmatpush1.msra.mxu0 %v1281
    %1748 = vmatprep.subr.mxu0 0.0
    %1749 = vmatpush1.msra.mxu0 %v1286
    %1750 = vmatprep.subr.mxu0 0.0
    %1751 = vmatpush1.msra.mxu0 %v1291
    %1752 = vmatprep.subr.mxu0 0.0
    %1753 = vmatpush1.msra.mxu0 %v1296
    %1754 = vmatprep.subr.mxu0 0.0
    %1755 = vmatpush1.msra.mxu0 %v1301
    %1756 = vmatprep.subr.mxu0 0.0
    %1757 = vmatpush1.msra.mxu0 %v1306
    %1758 = vmatprep.subr.mxu0 0.0
    %1759 = vmatpush1.msra.mxu0 %v1311
    %1760 = vmatprep.subr.mxu0 0.0
    %1761 = vmatpush1.msra.mxu0 %v1316
    %1762 = vmatprep.mubr.f32.mxu0 %v996
    %1763 = vmatmul.mubr.f32.gmra.mrb[0].mxu0 %v995
    %v1764 = vpop.f32.mrb[0].mxu0
    %v1765 = vadd.f32 %v1695, %v1764
    %v1766 = vpop.f32.mrb[0].mxu0
    %1767 = vdwg.mxu0
    %v1768 = vmax.f32 %v1482, 0.0
    %v1769 = vmax.f32 %v1484, 0.0
    %v1770 = vmax.f32 %v1624, 0.0
    %v1771 = vmax.f32 %v1626, 0.0
    %v1772 = vmax.f32 %v1765, 0.0
    %v1773 = vld [vmem:[#allocation12] sm:$0xff]
    %v1774 = vld [vmem:[#allocation12 + $0x8] sm:$0xff]
    %v1775 = vld [vmem:[#allocation12 + $0x10] sm:$0xff]
    %v1776 = vld [vmem:[#allocation12 + $0x18] sm:$0xff]
    %v1777 = vld [vmem:[#allocation12 + $0x20] sm:$0xff]
    %v1778 = vld [vmem:[#allocation12 + $0x28] sm:$0xff]
    %v1779 = vld [vmem:[#allocation12 + $0x30] sm:$0xff]
    %v1780 = vld [vmem:[#allocation12 + $0x38] sm:$0xff]
    %v1781 = vld [vmem:[#allocation12 + $0x40] sm:$0xff]
    %v1782 = vld [vmem:[#allocation12 + $0x48] sm:$0xff]
    %v1783 = vld [vmem:[#allocation12 + $0x50] sm:$0xff]
    %v1784 = vld [vmem:[#allocation12 + $0x58] sm:$0xff]
    %v1785 = vld [vmem:[#allocation12 + $0x60] sm:$0xff]
    %v1786 = vld [vmem:[#allocation12 + $0x68] sm:$0xff]
    %v1787 = vld [vmem:[#allocation12 + $0x70] sm:$0xff]
    %v1788 = vld [vmem:[#allocation12 + $0x78] sm:$0xff]
    %v1789 = vld [vmem:[#allocation12 + $0x80] sm:$0xff]
    %v1790 = vld [vmem:[#allocation12 + $0x88] sm:$0xff]
    %v1791 = vld [vmem:[#allocation12 + $0x90] sm:$0xff]
    %v1792 = vld [vmem:[#allocation12 + $0x98] sm:$0xff]
    %v1793 = vld [vmem:[#allocation12 + $0xa0] sm:$0xff]
    %v1794 = vld [vmem:[#allocation12 + $0xa8] sm:$0xff]
    %v1795 = vld [vmem:[#allocation12 + $0xb0] sm:$0xff]
    %v1796 = vld [vmem:[#allocation12 + $0xb8] sm:$0xff]
    %v1797 = vld [vmem:[#allocation12 + $0xc0] sm:$0xff]
    %v1798 = vld [vmem:[#allocation12 + $0xc8] sm:$0xff]
    %v1799 = vld [vmem:[#allocation12 + $0xd0] sm:$0xff]
    %v1800 = vld [vmem:[#allocation12 + $0xd8] sm:$0xff]
    %v1801 = vld [vmem:[#allocation12 + $0xe0] sm:$0xff]
    %v1802 = vld [vmem:[#allocation12 + $0xe8] sm:$0xff]
    %v1803 = vld [vmem:[#allocation12 + $0xf0] sm:$0xff]
    %v1804 = vld [vmem:[#allocation12 + $0xf8] sm:$0xff]
    %v1805 = vld [vmem:[#allocation12 + $0x100] sm:$0xff]
    %v1806 = vld [vmem:[#allocation12 + $0x108] sm:$0xff]
    %v1807 = vld [vmem:[#allocation12 + $0x110] sm:$0xff]
    %v1808 = vld [vmem:[#allocation12 + $0x118] sm:$0xff]
    %v1809 = vld [vmem:[#allocation12 + $0x120] sm:$0xff]
    %v1810 = vld [vmem:[#allocation12 + $0x128] sm:$0xff]
    %v1811 = vld [vmem:[#allocation12 + $0x130] sm:$0xff]
    %v1812 = vld [vmem:[#allocation12 + $0x138] sm:$0xff]
    %v1813 = vld [vmem:[#allocation12 + $0x140] sm:$0xff]
    %v1814 = vld [vmem:[#allocation12 + $0x148] sm:$0xff]
    %v1815 = vld [vmem:[#allocation12 + $0x150] sm:$0xff]
    %v1816 = vld [vmem:[#allocation12 + $0x158] sm:$0xff]
    %v1817 = vld [vmem:[#allocation12 + $0x160] sm:$0xff]
    %v1818 = vld [vmem:[#allocation12 + $0x168] sm:$0xff]
    %v1819 = vld [vmem:[#allocation12 + $0x170] sm:$0xff]
    %v1820 = vld [vmem:[#allocation12 + $0x178] sm:$0xff]
    %v1821 = vld [vmem:[#allocation12 + $0x180] sm:$0xff]
    %v1822 = vld [vmem:[#allocation12 + $0x188] sm:$0xff]
    %v1823 = vld [vmem:[#allocation12 + $0x190] sm:$0xff]
    %v1824 = vld [vmem:[#allocation12 + $0x198] sm:$0xff]
    %v1825 = vld [vmem:[#allocation12 + $0x1a0] sm:$0xff]
    %v1826 = vld [vmem:[#allocation12 + $0x1a8] sm:$0xff]
    %v1827 = vld [vmem:[#allocation12 + $0x1b0] sm:$0xff]
    %v1828 = vld [vmem:[#allocation12 + $0x1b8] sm:$0xff]
    %v1829 = vld [vmem:[#allocation12 + $0x1c0] sm:$0xff]
    %v1830 = vld [vmem:[#allocation12 + $0x1c8] sm:$0xff]
    %v1831 = vld [vmem:[#allocation12 + $0x1d0] sm:$0xff]
    %v1832 = vld [vmem:[#allocation12 + $0x1d8] sm:$0xff]
    %v1833 = vld [vmem:[#allocation12 + $0x1e0] sm:$0xff]
    %v1834 = vld [vmem:[#allocation12 + $0x1e8] sm:$0xff]
    %v1835 = vld [vmem:[#allocation12 + $0x1f0] sm:$0xff]
    %v1836 = vld [vmem:[#allocation12 + $0x1f8] sm:$0xff]
    %v1837 = vld [vmem:[#allocation12 + $0x200] sm:$0xff]
    %v1838 = vld [vmem:[#allocation12 + $0x208] sm:$0xff]
    %v1839 = vld [vmem:[#allocation12 + $0x210] sm:$0xff]
    %v1840 = vld [vmem:[#allocation12 + $0x218] sm:$0xff]
    %v1841 = vld [vmem:[#allocation12 + $0x220] sm:$0xff]
    %v1842 = vld [vmem:[#allocation12 + $0x228] sm:$0xff]
    %v1843 = vld [vmem:[#allocation12 + $0x230] sm:$0xff]
    %v1844 = vld [vmem:[#allocation12 + $0x238] sm:$0xff]
    %v1845 = vld [vmem:[#allocation12 + $0x240] sm:$0xff]
    %v1846 = vld [vmem:[#allocation12 + $0x248] sm:$0xff]
    %v1847 = vld [vmem:[#allocation12 + $0x250] sm:$0xff]
    %v1848 = vld [vmem:[#allocation12 + $0x258] sm:$0xff]
    %v1849 = vld [vmem:[#allocation12 + $0x260] sm:$0xff]
    %v1850 = vld [vmem:[#allocation12 + $0x268] sm:$0xff]
    %v1851 = vld [vmem:[#allocation12 + $0x270] sm:$0xff]
    %v1852 = vld [vmem:[#allocation12 + $0x278] sm:$0xff]
    %v1853 = vld [vmem:[#allocation13] sm:$0x1]
    %v1855 = vlaneseq
    %v1856 = vshrl.u32 %v1855, 7
    %v1857 = vsub.s32 0, %v1856
    %v1858 = vrot.slane %v1853, %v1857
    %1860 = vmatprep.subr.mxu0 0.0
    %1861 = vmatpush1.msra.mxu0 %v1773
    %1862 = vmatprep.subr.mxu0 0.0
    %1863 = vmatpush1.msra.mxu0 %v1774
    %1864 = vmatprep.subr.mxu0 0.0
    %1865 = vmatpush1.msra.mxu0 %v1775
    %1866 = vmatprep.subr.mxu0 0.0
    %1867 = vmatpush1.msra.mxu0 %v1776
    %1868 = vmatprep.subr.mxu0 0.0
    %1869 = vmatpush1.msra.mxu0 %v1777
    %1870 = vmatprep.subr.mxu0 0.0
    %1871 = vmatpush1.msra.mxu0 %v1778
    %1872 = vmatprep.subr.mxu0 0.0
    %1873 = vmatpush1.msra.mxu0 %v1779
    %1874 = vmatprep.subr.mxu0 0.0
    %1875 = vmatpush1.msra.mxu0 %v1780
    %1876 = vmatprep.subr.mxu0 0.0
    %1877 = vmatpush1.msra.mxu0 %v1781
    %1878 = vmatprep.subr.mxu0 0.0
    %1879 = vmatpush1.msra.mxu0 %v1782
    %1880 = vmatprep.subr.mxu0 0.0
    %1881 = vmatpush1.msra.mxu0 %v1783
    %1882 = vmatprep.subr.mxu0 0.0
    %1883 = vmatpush1.msra.mxu0 %v1784
    %1884 = vmatprep.subr.mxu0 0.0
    %1885 = vmatpush1.msra.mxu0 %v1785
    %1886 = vmatprep.subr.mxu0 0.0
    %1887 = vmatpush1.msra.mxu0 %v1786
    %1888 = vmatprep.subr.mxu0 0.0
    %1889 = vmatpush1.msra.mxu0 %v1787
    %1890 = vmatprep.subr.mxu0 0.0
    %1891 = vmatpush1.msra.mxu0 %v1788
    %1892 = vmatprep.subr.mxu0 0.0
    %1893 = vmatpush1.msra.mxu0 %v1789
    %1894 = vmatprep.subr.mxu0 0.0
    %1895 = vmatpush1.msra.mxu0 %v1790
    %1896 = vmatprep.subr.mxu0 0.0
    %1897 = vmatpush1.msra.mxu0 %v1791
    %1898 = vmatprep.subr.mxu0 0.0
    %1899 = vmatpush1.msra.mxu0 %v1792
    %1900 = vmatprep.subr.mxu0 0.0
    %1901 = vmatpush1.msra.mxu0 %v1793
    %1902 = vmatprep.subr.mxu0 0.0
    %1903 = vmatpush1.msra.mxu0 %v1794
    %1904 = vmatprep.subr.mxu0 0.0
    %1905 = vmatpush1.msra.mxu0 %v1795
    %1906 = vmatprep.subr.mxu0 0.0
    %1907 = vmatpush1.msra.mxu0 %v1796
    %1908 = vmatprep.subr.mxu0 0.0
    %1909 = vmatpush1.msra.mxu0 %v1797
    %1910 = vmatprep.subr.mxu0 0.0
    %1911 = vmatpush1.msra.mxu0 %v1798
    %1912 = vmatprep.subr.mxu0 0.0
    %1913 = vmatpush1.msra.mxu0 %v1799
    %1914 = vmatprep.subr.mxu0 0.0
    %1915 = vmatpush1.msra.mxu0 %v1800
    %1916 = vmatprep.subr.mxu0 0.0
    %1917 = vmatpush1.msra.mxu0 %v1801
    %1918 = vmatprep.subr.mxu0 0.0
    %1919 = vmatpush1.msra.mxu0 %v1802
    %1920 = vmatprep.subr.mxu0 0.0
    %1921 = vmatpush1.msra.mxu0 %v1803
    %1922 = vmatprep.subr.mxu0 0.0
    %1923 = vmatpush1.msra.mxu0 %v1804
    %1924 = vmatprep.mubr.f32.mxu0 %v1769
    %1925 = vmatmul.mubr.f32.gmra.mrb[0].mxu0 %v1768
    %v1926 = vpop.f32.mrb[0].mxu0
    %v1927 = vadd.f32 %v1858, %v1926
    %v1928 = vpop.f32.mrb[0].mxu0
    %1929 = vdwg.mxu0
    %1930 = vmatprep.subr.mxu0 0.0
    %1931 = vmatpush1.msra.mxu0 %v1805
    %1932 = vmatprep.subr.mxu0 0.0
    %1933 = vmatpush1.msra.mxu0 %v1806
    %1934 = vmatprep.subr.mxu0 0.0
    %1935 = vmatpush1.msra.mxu0 %v1807
    %1936 = vmatprep.subr.mxu0 0.0
    %1937 = vmatpush1.msra.mxu0 %v1808
    %1938 = vmatprep.subr.mxu0 0.0
    %1939 = vmatpush1.msra.mxu0 %v1809
    %1940 = vmatprep.subr.mxu0 0.0
    %1941 = vmatpush1.msra.mxu0 %v1810
    %1942 = vmatprep.subr.mxu0 0.0
    %1943 = vmatpush1.msra.mxu0 %v1811
    %1944 = vmatprep.subr.mxu0 0.0
    %1945 = vmatpush1.msra.mxu0 %v1812
    %1946 = vmatprep.subr.mxu0 0.0
    %1947 = vmatpush1.msra.mxu0 %v1813
    %1948 = vmatprep.subr.mxu0 0.0
    %1949 = vmatpush1.msra.mxu0 %v1814
    %1950 = vmatprep.subr.mxu0 0.0
    %1951 = vmatpush1.msra.mxu0 %v1815
    %1952 = vmatprep.subr.mxu0 0.0
    %1953 = vmatpush1.msra.mxu0 %v1816
    %1954 = vmatprep.subr.mxu0 0.0
    %1955 = vmatpush1.msra.mxu0 %v1817
    %1956 = vmatprep.subr.mxu0 0.0
    %1957 = vmatpush1.msra.mxu0 %v1818
    %1958 = vmatprep.subr.mxu0 0.0
    %1959 = vmatpush1.msra.mxu0 %v1819
    %1960 = vmatprep.subr.mxu0 0.0
    %1961 = vmatpush1.msra.mxu0 %v1820
    %1962 = vmatprep.subr.mxu0 0.0
    %1963 = vmatpush1.msra.mxu0 %v1821
    %1964 = vmatprep.subr.mxu0 0.0
    %1965 = vmatpush1.msra.mxu0 %v1822
    %1966 = vmatprep.subr.mxu0 0.0
    %1967 = vmatpush1.msra.mxu0 %v1823
    %1968 = vmatprep.subr.mxu0 0.0
    %1969 = vmatpush1.msra.mxu0 %v1824
    %1970 = vmatprep.subr.mxu0 0.0
    %1971 = vmatpush1.msra.mxu0 %v1825
    %1972 = vmatprep.subr.mxu0 0.0
    %1973 = vmatpush1.msra.mxu0 %v1826
    %1974 = vmatprep.subr.mxu0 0.0
    %1975 = vmatpush1.msra.mxu0 %v1827
    %1976 = vmatprep.subr.mxu0 0.0
    %1977 = vmatpush1.msra.mxu0 %v1828
    %1978 = vmatprep.subr.mxu0 0.0
    %1979 = vmatpush1.msra.mxu0 %v1829
    %1980 = vmatprep.subr.mxu0 0.0
    %1981 = vmatpush1.msra.mxu0 %v1830
    %1982 = vmatprep.subr.mxu0 0.0
    %1983 = vmatpush1.msra.mxu0 %v1831
    %1984 = vmatprep.subr.mxu0 0.0
    %1985 = vmatpush1.msra.mxu0 %v1832
    %1986 = vmatprep.subr.mxu0 0.0
    %1987 = vmatpush1.msra.mxu0 %v1833
    %1988 = vmatprep.subr.mxu0 0.0
    %1989 = vmatpush1.msra.mxu0 %v1834
    %1990 = vmatprep.subr.mxu0 0.0
    %1991 = vmatpush1.msra.mxu0 %v1835
    %1992 = vmatprep.subr.mxu0 0.0
    %1993 = vmatpush1.msra.mxu0 %v1836
    %1994 = vmatprep.mubr.f32.mxu0 %v1771
    %1995 = vmatmul.mubr.f32.gmra.mrb[0].mxu0 %v1770
    %v1996 = vpop.f32.mrb[0].mxu0
    %v1997 = vadd.f32 %v1927, %v1996
    %v1998 = vpop.f32.mrb[0].mxu0
    %1999 = vdwg.mxu0
    %2000 = vmatprep.subr.mxu0 0.0
    %2001 = vmatpush1.msra.mxu0 %v1837
    %2002 = vmatprep.subr.mxu0 0.0
    %2003 = vmatpush1.msra.mxu0 %v1838
    %2004 = vmatprep.subr.mxu0 0.0
    %2005 = vmatpush1.msra.mxu0 %v1839
    %2006 = vmatprep.subr.mxu0 0.0
    %2007 = vmatpush1.msra.mxu0 %v1840
    %2008 = vmatprep.subr.mxu0 0.0
    %2009 = vmatpush1.msra.mxu0 %v1841
    %2010 = vmatprep.subr.mxu0 0.0
    %2011 = vmatpush1.msra.mxu0 %v1842
    %2012 = vmatprep.subr.mxu0 0.0
    %2013 = vmatpush1.msra.mxu0 %v1843
    %2014 = vmatprep.subr.mxu0 0.0
    %2015 = vmatpush1.msra.mxu0 %v1844
    %2016 = vmatprep.subr.mxu0 0.0
    %2017 = vmatpush1.msra.mxu0 %v1845
    %2018 = vmatprep.subr.mxu0 0.0
    %2019 = vmatpush1.msra.mxu0 %v1846
    %2020 = vmatprep.subr.mxu0 0.0
    %2021 = vmatpush1.msra.mxu0 %v1847
    %2022 = vmatprep.subr.mxu0 0.0
    %2023 = vmatpush1.msra.mxu0 %v1848
    %2024 = vmatprep.subr.mxu0 0.0
    %2025 = vmatpush1.msra.mxu0 %v1849
    %2026 = vmatprep.subr.mxu0 0.0
    %2027 = vmatpush1.msra.mxu0 %v1850
    %2028 = vmatprep.subr.mxu0 0.0
    %2029 = vmatpush1.msra.mxu0 %v1851
    %2030 = vmatprep.subr.mxu0 0.0
    %2031 = vmatpush1.msra.mxu0 %v1852
    %2032 = vmatprep.subr.mxu0 0.0
    %2033 = vmatpush1.msra.mxu0 0.0
    %2034 = vmatprep.subr.mxu0 0.0
    %2035 = vmatpush1.msra.mxu0 0.0
    %2036 = vmatprep.subr.mxu0 0.0
    %2037 = vmatpush1.msra.mxu0 0.0
    %2038 = vmatprep.subr.mxu0 0.0
    %2039 = vmatpush1.msra.mxu0 0.0
    %2040 = vmatprep.subr.mxu0 0.0
    %2041 = vmatpush1.msra.mxu0 0.0
    %2042 = vmatprep.subr.mxu0 0.0
    %2043 = vmatpush1.msra.mxu0 0.0
    %2044 = vmatprep.subr.mxu0 0.0
    %2045 = vmatpush1.msra.mxu0 0.0
    %2046 = vmatprep.subr.mxu0 0.0
    %2047 = vmatpush1.msra.mxu0 0.0
    %2048 = vmatprep.subr.mxu0 0.0
    %2049 = vmatpush1.msra.mxu0 0.0
    %2050 = vmatprep.subr.mxu0 0.0
    %2051 = vmatpush1.msra.mxu0 0.0
    %2052 = vmatprep.subr.mxu0 0.0
    %2053 = vmatpush1.msra.mxu0 0.0
    %2054 = vmatprep.subr.mxu0 0.0
    %2055 = vmatpush1.msra.mxu0 0.0
    %2056 = vmatprep.subr.mxu0 0.0
    %2057 = vmatpush1.msra.mxu0 0.0
    %2058 = vmatprep.subr.mxu0 0.0
    %2059 = vmatpush1.msra.mxu0 0.0
    %2060 = vmatprep.subr.mxu0 0.0
    %2061 = vmatpush1.msra.mxu0 0.0
    %2062 = vmatprep.subr.mxu0 0.0
    %2063 = vmatpush1.msra.mxu0 0.0
    %2064 = vmatprep.mubr.f32.mxu0 0.0
    %2065 = vmatmul.mubr.f32.gmra.mrb[0].mxu0 %v1772
    %v2066 = vpop.f32.mrb[0].mxu0
    %v2067 = vadd.f32 %v1997, %v2066
    %v2068 = vpop.f32.mrb[0].mxu0
    %2069 = vdwg.mxu0
    %2070 = vst [vmem:[%s9] sm:$0xff] %v2067
    // Predicated region
    $region70: #{_lambda_.1} parent=1 // pred_check
      _
    $region71: #{_lambda_.1} parent=1 // pred_check_branch
      %2072 = sbr.rel (0) target = $region73
    $region72: #{_lambda_.1} parent=1 // pred_region
      _
    $region73: #{_lambda_.1} parent=1 // pred_fallthru
      _
    // Predicated region
    $region74: #{_lambda_.1} parent=1 // pred_check
      _
    $region75: #{_lambda_.1} parent=1 // pred_check_branch
      %2074 = sbr.rel (0) target = $region77
    $region76: #{_lambda_.1} parent=1 // pred_region
      _
    $region77: #{_lambda_.1} parent=1 // pred_fallthru
      _
    %2075 = vsyncpa [#allocation3], 1
    %2076 = vsyncpa [#allocation5], 1
    %2077 = vsyncpa [#allocation8], 1
    %2078 = vsyncpa [#allocation11], 1
    %2079 = vsyncpa [#allocation14], 1

</llo_original>
